<compile_context>
chip_gen: v7x
topology: tpu7x:2x2x1
jax: 0.10.0
libtpu: 0.0.40
codegen_flags: <defaults>
</compile_context>

<pallas_src>
import jax
import jax.numpy as jnp
from jax import lax
from jax.experimental import pallas as pl
from jax.experimental.pallas import tpu as pltpu


# --------------------------------------------------------------------------- kernel
def _single_head_kernel(x_ref, wk_ref, wq_ref, wlm_ref, o_ref, outs_ref):
    """Grid = (batch_blocks, vocab_tiles); vocab tiles iterate innermost.

    x_ref   : (Bb, T, Dp)  bf16  token+pos embeddings (Dp = lane-padded d_model)
    wk_ref  : (Dp, Dp)     bf16  key projection, (in, out) layout, 1/sqrt(d_model) pre-folded
    wq_ref  : (Dp, Dp)     bf16  query projection, (in, out) layout
    wlm_ref : (Dp, TV)     bf16  lm_head slice, (in, out) layout
    o_ref   : (Bb, T, TV)  bf16/f32 logits tile
    outs_ref: (Bb, T, Dp)  bf16  VMEM scratch: attention output, computed once per batch block
                                 (at vocab tile 0) and reused for every vocab tile.

    CORRECTNESS INVARIANT: the vocab axis MUST remain the innermost, sequential ("arbitrary")
    grid axis — outs_ref written at v == 0 is consumed by all later vocab tiles of that block.
    """
    v_idx = pl.program_id(1)

    @pl.when(v_idx == 0)
    def _compute_attention():
        x = x_ref[...]                                   # (Bb, T, Dp) bf16
        bb, t, dp = x.shape
        x2 = x.reshape(bb * t, dp)                       # bigger M for the MXU

        # x @ W.T done as x @ W_pretransposed (no in-kernel transpose).
        # 1/sqrt(d_model) is already folded into wk (keys only feed the score matmul).
        keys = jnp.dot(x2, wk_ref[...], preferred_element_type=jnp.float32)
        queries = jnp.dot(x2, wq_ref[...], preferred_element_type=jnp.float32)
        k_b = keys.astype(jnp.bfloat16).reshape(bb, t, dp)
        q_b = queries.astype(jnp.bfloat16).reshape(bb, t, dp)
        # Reference bug reproduced: values == query projection -> q_b reused, no 3rd matmul.

        # Contract the Dp axis of both operands directly (no keys.T materialized).
        attn = jnp.einsum('bqd,bkd->bqk', q_b, k_b,
                          preferred_element_type=jnp.float32)            # (Bb, T, T)

        # Causal (lower-triangular) mask from one (T, T) iota pair, broadcast across batch.
        row = lax.broadcasted_iota(jnp.int32, (t, t), 0)
        col = lax.broadcasted_iota(jnp.int32, (t, t), 1)
        attn = jnp.where((col <= row)[None, :, :], attn, jnp.float32(-jnp.inf))

        # Numerically stable softmax; reciprocal on the EUP slot (off the VALU critical path).
        m = jnp.max(attn, axis=-1, keepdims=True)
        e = jnp.exp(attn - m)
        p = e * pl.reciprocal(jnp.sum(e, axis=-1, keepdims=True), approx=True)

        # values == queries (reference bug); bf16 MXU inputs, f32 accumulation.
        outs = jnp.einsum('bqk,bkd->bqd', p.astype(jnp.bfloat16), q_b,
                          preferred_element_type=jnp.float32)            # (Bb, T, Dp)
        outs_ref[...] = outs.astype(outs_ref.dtype)
        # TODO(synk): flash-style online softmax over KV tiles for long T (bounds the (Bb,T,T)
        # temporaries), and double-buffer outs_ref to hide this per-batch-block bubble.

    # lm_head slice for this vocab tile: (Bb*T, Dp) @ (Dp, TV)
    outs = outs_ref[...]
    bb, t, dp = outs.shape
    logits = jnp.dot(outs.reshape(bb * t, dp), wlm_ref[...],
                     preferred_element_type=jnp.float32)
    o_ref[...] = logits.reshape(bb, t, -1).astype(o_ref.dtype)


# --------------------------------------------------------------- one-time parameter prep
def prepare_params(params, *, lane=128):
    """Hoisted out of the per-forward path: transpose weights to (in, out), cast to bf16,
    lane-pad d_model to a multiple of 128 (zero padding -> identical logits), and fold
    1/sqrt(d_model) into the key weight."""
    embed_w = params["embed"].astype(jnp.float32)        # (V, D)
    pos_w = params["pos_embed"].astype(jnp.float32)      # (ctx, D)
    wk = params["wk"].astype(jnp.float32)                # (D, D)
    wq = params["wq"].astype(jnp.float32)                # (D, D)
    wlm = params["wlm"].astype(jnp.float32)              # (V, D)

    d_model = embed_w.shape[1]
    dp = ((d_model + lane - 1) // lane) * lane
    pad = dp - d_model
    scale = float(d_model) ** -0.5                       # reference: keys.shape[-1] ** -0.5

    pad_cols = (lambda w: jnp.pad(w, ((0, 0), (0, pad)))) if pad else (lambda w: w)
    pad_both = (lambda w: jnp.pad(w, ((0, pad), (0, pad)))) if pad else (lambda w: w)
    pad_rows = (lambda w: jnp.pad(w, ((0, pad), (0, 0)))) if pad else (lambda w: w)

    return {
        "embed": pad_cols(embed_w).astype(jnp.bfloat16),            # (V, Dp)
        "pos_embed": pad_cols(pos_w).astype(jnp.bfloat16),          # (ctx, Dp)
        "wk_t": pad_both(wk.T * scale).astype(jnp.bfloat16),        # (Dp, Dp), scale folded in
        "wq_t": pad_both(wq.T).astype(jnp.bfloat16),                # (Dp, Dp)
        "wlm_t": pad_rows(wlm.T).astype(jnp.bfloat16),              # (Dp, V)
        "context_length": pos_w.shape[0],
        "d_model": d_model,
    }


def _vmem_limit_bytes():
    """Per-generation VMEM budget: ~3/4 of physical capacity (~48 MiB v7x, ~96 MiB v5e/v6e)."""
    try:
        cap = int(pltpu.get_tpu_info().vmem_capacity_bytes)
    except Exception:
        cap = 64 * 1024 * 1024   # conservative fallback, safe on every generation
    return cap * 3 // 4


# --------------------------------------------------------------------------- forward
def single_head_forward(tokens, prepared, *, max_vocab_tile=None, out_dtype=jnp.bfloat16):
    """Forward pass of SingleHeadModel (targets=None path).

    tokens: (B, T) int32, T <= context_length, T % 8 == 0
    returns: (logits (B, T, vocab_size) in out_dtype, None)
    """
    B, T = tokens.shape
    assert T <= prepared["context_length"]
    # TODO(synk): pad T up to a multiple of 8 (and mask) for ragged sequence lengths.
    assert T % 8 == 0, "T must be a multiple of 8 (sublane tiling)"

    embed_w = prepared["embed"]       # (V, Dp) bf16
    pos_w = prepared["pos_embed"]     # (ctx, Dp) bf16
    wk_t = prepared["wk_t"]           # (Dp, Dp) bf16 (scale folded)
    wq_t = prepared["wq_t"]           # (Dp, Dp) bf16
    wlm_t = prepared["wlm_t"]         # (Dp, V)  bf16

    dp = embed_w.shape[1]
    V = wlm_t.shape[1]
    out_bytes = jnp.dtype(out_dtype).itemsize
    vmem_limit = _vmem_limit_bytes()

    # ---- glue: embedding gather stays in plain JAX ----
    embeds = jnp.take(embed_w, tokens, axis=0) + pos_w[:T][None, :, :]   # (B, T, Dp) bf16

    # ---- VMEM-budgeted tiling ----
    def vmem_estimate(bb, tv):
        x_blk = 2 * bb * T * dp * 2                        # double-buffered input block
        weights = 2 * 2 * dp * dp * 2                      # wk + wq (counted double-buffered)
        wlm_blk = 2 * dp * tv * 2                          # double-buffered lm_head slice
        out_blk = 2 * bb * T * tv * out_bytes              # double-buffered output tile
        scratch = bb * T * dp * 2                          # attention-output scratch
        attn_tmp = 3 * bb * T * T * 4 + 2 * bb * T * dp * 4  # live f32 softmax temporaries
        return x_blk + weights + wlm_blk + out_blk + scratch + attn_tmp

    min_tv = 128 if V % 128 == 0 else V

    # Batch block: largest divisor of B that fits the budget (bigger bb*T -> better lm_head
    # arithmetic intensity and fewer full wlm re-reads), but keep >= 2 batch blocks when
    # possible so both v7x TensorCores get work on the "parallel" axis.
    divisors = [d for d in range(1, B + 1) if B % d == 0]
    cands = [d for d in divisors if B // d >= 2] or divisors
    bb = next((d for d in sorted(cands, reverse=True)
               if vmem_estimate(d, min_tv) <= vmem_limit), min(cands))

    # Vocab tile: largest lane-dense divisor of V that fits (prefer multiples of 256 for the
    # 256-wide v6e/v7x MXU; 128-multiples are already optimal on v5e).
    if V % 128 == 0:
        cap = V if max_vocab_tile is None else max(128, min(V, max_vocab_tile))
        tv_cands = sorted((t for t in range(128, cap + 1, 128) if V % t == 0), reverse=True)
        tv = None
        for prefer_256 in (True, False):
            for t in tv_cands:
                if prefer_256 and t % 256 != 0:
                    continue
                if vmem_estimate(bb, t) <= vmem_limit:
                    tv = t
                    break
            if tv is not None:
                break
        if tv is None:
            tv = 128
    else:
        tv = V   # full-vocab block (legal: equals the full array dim)

    grid = (B // bb, V // tv)

    def build(single_buffer_weights):
        # wk/wq block index never changes -> resident; Buffered(1) drops the dead 2nd buffer.
        wkw = dict(pipeline_mode=pl.Buffered(1)) if single_buffer_weights else {}
        grid_spec = pltpu.PrefetchScalarGridSpec(
            num_scalar_prefetch=0,
            grid=grid,
            in_specs=[
                pl.BlockSpec((bb, T, dp), lambda b, v: (b, 0, 0)),
                pl.BlockSpec((dp, dp), lambda b, v: (0, 0), **wkw),
                pl.BlockSpec((dp, dp), lambda b, v: (0, 0), **wkw),
                pl.BlockSpec((dp, tv), lambda b, v: (0, v)),
            ],
            out_specs=pl.BlockSpec((bb, T, tv), lambda b, v: (b, 0, v)),
            scratch_shapes=[pltpu.VMEM((bb, T, dp), jnp.bfloat16)],
        )
        return pl.pallas_call(
            _single_head_kernel,
            out_shape=jax.ShapeDtypeStruct((B, T, V), out_dtype),
            grid_spec=grid_spec,
            compiler_params=pltpu.CompilerParams(
                # batch axis shards across TensorCores (v7x); vocab axis MUST stay sequential
                # ("arbitrary", innermost): the attention scratch is written at v == 0.
                dimension_semantics=("parallel", "arbitrary"),
                vmem_limit_bytes=vmem_limit,
            ),
        )

    try:
        logits = jax.block_until_ready(build(True)(embeds, wk_t, wq_t, wlm_t))
    except Exception:
        # pl.Buffered(1) not supported by this jax build -> default double buffering.
        logits = build(False)(embeds, wk_t, wq_t, wlm_t)

    # TODO(synk): fused softmax/cross-entropy (targets != None) so full logits never hit HBM.
    return logits, None


# --------------------------------------------------------------------------- reference
def _reference_forward(tokens, params, context_length):
    """Pure-JAX f32 reference mirroring the PyTorch module exactly."""
    B, T = tokens.shape
    embed_w, pos_embed_w = params["embed"], params["pos_embed"]
    wk, wq, wlm = params["wk"], params["wq"], params["wlm"]
    d_model = embed_w.shape[1]

    x = jnp.take(embed_w, tokens, axis=0) + pos_embed_w[:T][None, :, :]
    keys = x @ wk.T
    queries = x @ wq.T
    values = x @ wq.T  # reference bug reproduced
    attn = (queries @ jnp.swapaxes(keys, -2, -1)) * (d_model ** -0.5)
    mask = jnp.tril(jnp.ones((T, T), dtype=bool))
    attn = jnp.where(mask[None], attn, -jnp.inf)
    attn = jax.nn.softmax(attn, axis=-1)
    outs = attn @ values
    return outs @ wlm.T


if __name__ == "__main__":
    # Small, TPU-friendly synthetic shapes; chosen so both grid axes have >1 tile.
    B = 4
    T = 8
    context_length = 16
    d_model = 32
    vocab_size = 256

    key = jax.random.PRNGKey(0)
    k_emb, k_pos, k_wk, k_wq, k_wlm, k_tok = jax.random.split(key, 6)

    params = {
        "embed": jax.random.normal(k_emb, (vocab_size, d_model), jnp.float32) * 0.02,
        "pos_embed": jax.random.normal(k_pos, (context_length, d_model), jnp.float32) * 0.02,
        "wk": jax.random.normal(k_wk, (d_model, d_model), jnp.float32) * (d_model ** -0.5),
        "wq": jax.random.normal(k_wq, (d_model, d_model), jnp.float32) * (d_model ** -0.5),
        "wlm": jax.random.normal(k_wlm, (vocab_size, d_model), jnp.float32) * (d_model ** -0.5),
    }
    tokens = jax.random.randint(k_tok, (B, T), 0, vocab_size, dtype=jnp.int32)

    # One-time parameter prep: transpose, bf16 cast, lane-pad d_model to 128, fold 1/sqrt(D).
    prepared = prepare_params(params)

    # max_vocab_tile=128 -> grid (2, 2): exercises batch blocking, vocab tiling, and the
    # attention-scratch reuse path at these small demo shapes.
    logits, loss = single_head_forward(tokens, prepared, max_vocab_tile=128)
    logits = jax.block_until_ready(logits)

    ref = _reference_forward(tokens, params, context_length)
    assert logits.shape == (B, T, vocab_size)
    assert logits.dtype == jnp.bfloat16
    assert loss is None
    # bf16 MXU inputs / bf16 logits with f32 accumulation + approx reciprocal -> bf16 tolerance.
    logits_f32 = logits.astype(jnp.float32)
    max_err = float(jnp.max(jnp.abs(logits_f32 - ref)))
    assert jnp.allclose(logits_f32, ref, atol=1e-2, rtol=1e-2), \
        f"mismatch vs reference, max_err={max_err}"

    print("KERNEL_OK")
</pallas_src>

<mosaic_0001>
module attributes {stable_mosaic.version = 11 : i64} {
  func.func @_single_head_kernel(%arg0: i32, %arg1: i32, %arg2: memref<2x8x128xbf16, #tpu.memory_space<vmem>>, %arg3: memref<128x128xbf16, #tpu.memory_space<vmem>>, %arg4: memref<128x128xbf16, #tpu.memory_space<vmem>>, %arg5: memref<128x128xbf16, #tpu.memory_space<vmem>>, %arg6: memref<2x8x128xbf16, #tpu.memory_space<vmem>>, %arg7: memref<2x8x128xbf16, #tpu.memory_space<vmem>>) attributes {dimension_semantics = [#tpu.dimension_semantics<parallel>, #tpu.dimension_semantics<arbitrary>], iteration_bounds = array<i64: 2, 2>, scalar_prefetch = 0 : i64, scratch_operands = 1 : i64, tpu.core_type = #tpu.core_type<tc>, window_params = [{transform_indices = @transform_0, window_bounds = array<i64: 2, 8, 128>}, {pipeline_mode = #tpu.pipeline_mode<synchronous>, transform_indices = @transform_1, window_bounds = array<i64: 128, 128>}, {pipeline_mode = #tpu.pipeline_mode<synchronous>, transform_indices = @transform_2, window_bounds = array<i64: 128, 128>}, {transform_indices = @transform_3, window_bounds = array<i64: 128, 128>}, {transform_indices = @transform_4, window_bounds = array<i64: 2, 8, 128>}]} {
    %c0_i32 = arith.constant 0 : i32
    %0 = arith.cmpi eq, %arg1, %c0_i32 : i32
    %1 = arith.extui %0 : i1 to i32
    %c0_i32_0 = arith.constant 0 : i32
    %2 = arith.cmpi ne, %1, %c0_i32_0 : i32
    scf.if %2 {
      %c0_8 = arith.constant 0 : index
      %c0_9 = arith.constant 0 : index
      %c0_10 = arith.constant 0 : index
      %10 = vector.load %arg2[%c0_8, %c0_9, %c0_10] : memref<2x8x128xbf16, #tpu.memory_space<vmem>>, vector<2x8x128xbf16>
      %11 = vector.shape_cast %10 : vector<2x8x128xbf16> to vector<16x128xbf16>
      %c0_11 = arith.constant 0 : index
      %c0_12 = arith.constant 0 : index
      %12 = vector.load %arg3[%c0_11, %c0_12] : memref<128x128xbf16, #tpu.memory_space<vmem>>, vector<128x128xbf16>
      %cst_13 = arith.constant dense<0.000000e+00> : vector<16x128xf32>
      %13 = tpu.matmul %11, %12, %cst_13 {dimension_numbers = #tpu.dot_dimension_numbers<[1], [0], [0], [1], [0, 0, 1, 1], [], []>} : vector<16x128xbf16>, vector<128x128xbf16>, vector<16x128xf32> -> vector<16x128xf32>
      %c0_14 = arith.constant 0 : index
      %c0_15 = arith.constant 0 : index
      %14 = vector.load %arg4[%c0_14, %c0_15] : memref<128x128xbf16, #tpu.memory_space<vmem>>, vector<128x128xbf16>
      %cst_16 = arith.constant dense<0.000000e+00> : vector<16x128xf32>
      %15 = tpu.matmul %11, %14, %cst_16 {dimension_numbers = #tpu.dot_dimension_numbers<[1], [0], [0], [1], [0, 0, 1, 1], [], []>} : vector<16x128xbf16>, vector<128x128xbf16>, vector<16x128xf32> -> vector<16x128xf32>
      %16 = arith.truncf %13 : vector<16x128xf32> to vector<16x128xbf16>
      %17 = vector.shape_cast %16 : vector<16x128xbf16> to vector<2x8x128xbf16>
      %18 = arith.truncf %15 : vector<16x128xf32> to vector<16x128xbf16>
      %19 = vector.shape_cast %18 : vector<16x128xbf16> to vector<2x8x128xbf16>
      "tpu.trace_start"() <{level = 10 : i32, message = "bqd,bkd->bqk"}> : () -> ()
      %cst_17 = arith.constant dense<0.000000e+00> : vector<2x8x8xf32>
      %20 = tpu.matmul %19, %17, %cst_17 {dimension_numbers = #tpu.dot_dimension_numbers<[2], [2], [1], [1], [0, 0, 0, 1, 1, 1], [0], [0]>} : vector<2x8x128xbf16>, vector<2x8x128xbf16>, vector<2x8x8xf32> -> vector<2x8x8xf32>
      "tpu.trace_stop"() : () -> ()
      %21 = tpu.iota {dimensions = array<i32: 0>} : vector<8x8xi32>
      %22 = tpu.iota {dimensions = array<i32: 1>} : vector<8x8xi32>
      %23 = arith.cmpi sle, %22, %21 : vector<8x8xi32>
      %24 = vector.shape_cast %23 : vector<8x8xi1> to vector<1x8x8xi1>
      %cst_18 = arith.constant 0xFF800000 : f32
      %25 = vector.shape_cast %24 : vector<1x8x8xi1> to vector<1x8x8xi1>
      %26 = vector.broadcast %25 : vector<1x8x8xi1> to vector<2x8x8xi1>
      %27 = vector.broadcast %cst_18 : f32 to vector<2x8x8xf32>
      %28 = arith.select %26, %20, %27 : vector<2x8x8xi1>, vector<2x8x8xf32>
      %cst_19 = arith.constant dense<0xFF800000> : vector<2x8xf32>
      %29 = vector.multi_reduction <maximumf>, %28, %cst_19 [2] : vector<2x8x8xf32> to vector<2x8xf32>
      %30 = vector.shape_cast %29 : vector<2x8xf32> to vector<2x8x1xf32>
      %31 = vector.broadcast %30 : vector<2x8x1xf32> to vector<2x8x8xf32>
      %32 = arith.subf %28, %31 : vector<2x8x8xf32>
      %33 = math.exp %32 : vector<2x8x8xf32>
      %cst_20 = arith.constant dense<0.000000e+00> : vector<2x8xf32>
      %34 = vector.multi_reduction <add>, %33, %cst_20 [2] : vector<2x8x8xf32> to vector<2x8xf32>
      %35 = vector.shape_cast %34 : vector<2x8xf32> to vector<2x8x1xf32>
      %36 = tpu.reciprocal %35 {approx = true} : vector<2x8x1xf32> -> vector<2x8x1xf32>
      %37 = vector.broadcast %36 : vector<2x8x1xf32> to vector<2x8x8xf32>
      %38 = arith.mulf %33, %37 : vector<2x8x8xf32>
      %39 = arith.truncf %38 : vector<2x8x8xf32> to vector<2x8x8xbf16>
      "tpu.trace_start"() <{level = 10 : i32, message = "bqk,bkd->bqd"}> : () -> ()
      %cst_21 = arith.constant dense<0.000000e+00> : vector<2x8x128xf32>
      %40 = tpu.matmul %39, %19, %cst_21 {dimension_numbers = #tpu.dot_dimension_numbers<[2], [1], [1], [2], [0, 0, 0, 1, 1, 2], [0], [0]>} : vector<2x8x8xbf16>, vector<2x8x128xbf16>, vector<2x8x128xf32> -> vector<2x8x128xf32>
      "tpu.trace_stop"() : () -> ()
      %41 = arith.truncf %40 : vector<2x8x128xf32> to vector<2x8x128xbf16>
      %c0_22 = arith.constant 0 : index
      %c0_23 = arith.constant 0 : index
      %c0_24 = arith.constant 0 : index
      %42 = vector.load %arg7[%c0_22, %c0_23, %c0_24] : memref<2x8x128xbf16, #tpu.memory_space<vmem>>, vector<2x8x128xbf16>
      tpu.vector_store %arg7[%c0_22, %c0_23, %c0_24], %41 {strides = array<i32>} : memref<2x8x128xbf16, #tpu.memory_space<vmem>>, vector<2x8x128xbf16>,
    } else {
    }
    %c0 = arith.constant 0 : index
    %c0_1 = arith.constant 0 : index
    %c0_2 = arith.constant 0 : index
    %3 = vector.load %arg7[%c0, %c0_1, %c0_2] : memref<2x8x128xbf16, #tpu.memory_space<vmem>>, vector<2x8x128xbf16>
    %4 = vector.shape_cast %3 : vector<2x8x128xbf16> to vector<16x128xbf16>
    %c0_3 = arith.constant 0 : index
    %c0_4 = arith.constant 0 : index
    %5 = vector.load %arg5[%c0_3, %c0_4] : memref<128x128xbf16, #tpu.memory_space<vmem>>, vector<128x128xbf16>
    %cst = arith.constant dense<0.000000e+00> : vector<16x128xf32>
    %6 = tpu.matmul %4, %5, %cst {dimension_numbers = #tpu.dot_dimension_numbers<[1], [0], [0], [1], [0, 0, 1, 1], [], []>} : vector<16x128xbf16>, vector<128x128xbf16>, vector<16x128xf32> -> vector<16x128xf32>
    %7 = vector.shape_cast %6 : vector<16x128xf32> to vector<2x8x128xf32>
    %8 = arith.truncf %7 : vector<2x8x128xf32> to vector<2x8x128xbf16>
    %c0_5 = arith.constant 0 : index
    %c0_6 = arith.constant 0 : index
    %c0_7 = arith.constant 0 : index
    %9 = vector.load %arg6[%c0_5, %c0_6, %c0_7] : memref<2x8x128xbf16, #tpu.memory_space<vmem>>, vector<2x8x128xbf16>
    tpu.vector_store %arg6[%c0_5, %c0_6, %c0_7], %8 {strides = array<i32>} : memref<2x8x128xbf16, #tpu.memory_space<vmem>>, vector<2x8x128xbf16>,
    return
  }
  func.func @transform_0(%arg0: i32, %arg1: i32) -> (i32, i32, i32) {
    %c0_i32 = arith.constant 0 : i32
    %c0_i32_0 = arith.constant 0 : i32
    %c0_i32_1 = arith.constant 0 : i32
    return %arg0, %c0_i32, %c0_i32_0 : i32, i32, i32
  }
  func.func @transform_1(%arg0: i32, %arg1: i32) -> (i32, i32) {
    %c0_i32 = arith.constant 0 : i32
    %c0_i32_0 = arith.constant 0 : i32
    %c0_i32_1 = arith.constant 0 : i32
    return %c0_i32, %c0_i32_0 : i32, i32
  }
  func.func @transform_2(%arg0: i32, %arg1: i32) -> (i32, i32) {
    %c0_i32 = arith.constant 0 : i32
    %c0_i32_0 = arith.constant 0 : i32
    %c0_i32_1 = arith.constant 0 : i32
    return %c0_i32, %c0_i32_0 : i32, i32
  }
  func.func @transform_3(%arg0: i32, %arg1: i32) -> (i32, i32) {
    %c0_i32 = arith.constant 0 : i32
    %c0_i32_0 = arith.constant 0 : i32
    return %c0_i32, %arg1 : i32, i32
  }
  func.func @transform_4(%arg0: i32, %arg1: i32) -> (i32, i32, i32) {
    %c0_i32 = arith.constant 0 : i32
    %c0_i32_0 = arith.constant 0 : i32
    return %arg0, %c0_i32, %arg1 : i32, i32, i32
  }
}

module attributes {stable_mosaic.version = 11 : i64} {
  func.func @_single_head_kernel(%arg0: i32, %arg1: i32, %arg2: memref<2x8x128xbf16, #tpu.memory_space<vmem>>, %arg3: memref<128x128xbf16, #tpu.memory_space<vmem>>, %arg4: memref<128x128xbf16, #tpu.memory_space<vmem>>, %arg5: memref<128x128xbf16, #tpu.memory_space<vmem>>, %arg6: memref<2x8x128xbf16, #tpu.memory_space<vmem>>, %arg7: memref<2x8x128xbf16, #tpu.memory_space<vmem>>) attributes {dimension_semantics = [#tpu.dimension_semantics<parallel>, #tpu.dimension_semantics<arbitrary>], iteration_bounds = array<i64: 2, 2>, scalar_prefetch = 0 : i64, scratch_operands = 1 : i64, tpu.core_type = #tpu.core_type<tc>, window_params = [{transform_indices = @transform_0, window_bounds = array<i64: 2, 8, 128>}, {pipeline_mode = #tpu.pipeline_mode<synchronous>, transform_indices = @transform_1, window_bounds = array<i64: 128, 128>}, {pipeline_mode = #tpu.pipeline_mode<synchronous>, transform_indices = @transform_2, window_bounds = array<i64: 128, 128>}, {transform_indices = @transform_3, window_bounds = array<i64: 128, 128>}, {transform_indices = @transform_4, window_bounds = array<i64: 2, 8, 128>}]} {
    %c0_i32 = arith.constant 0 : i32
    %0 = arith.cmpi eq, %arg1, %c0_i32 : i32
    %1 = arith.extui %0 : i1 to i32
    %c0_i32_0 = arith.constant 0 : i32
    %2 = arith.cmpi ne, %1, %c0_i32_0 : i32
    scf.if %2 {
      %c0_8 = arith.constant 0 : index
      %c0_9 = arith.constant 0 : index
      %c0_10 = arith.constant 0 : index
      %10 = vector.load %arg2[%c0_8, %c0_9, %c0_10] : memref<2x8x128xbf16, #tpu.memory_space<vmem>>, vector<2x8x128xbf16>
      %11 = vector.shape_cast %10 : vector<2x8x128xbf16> to vector<16x128xbf16>
      %c0_11 = arith.constant 0 : index
      %c0_12 = arith.constant 0 : index
      %12 = vector.load %arg3[%c0_11, %c0_12] : memref<128x128xbf16, #tpu.memory_space<vmem>>, vector<128x128xbf16>
      %cst_13 = arith.constant dense<0.000000e+00> : vector<16x128xf32>
      %13 = tpu.matmul %11, %12, %cst_13 {dimension_numbers = #tpu.dot_dimension_numbers<[1], [0], [0], [1], [0, 0, 1, 1], [], []>} : vector<16x128xbf16>, vector<128x128xbf16>, vector<16x128xf32> -> vector<16x128xf32>
      %c0_14 = arith.constant 0 : index
      %c0_15 = arith.constant 0 : index
      %14 = vector.load %arg4[%c0_14, %c0_15] : memref<128x128xbf16, #tpu.memory_space<vmem>>, vector<128x128xbf16>
      %cst_16 = arith.constant dense<0.000000e+00> : vector<16x128xf32>
      %15 = tpu.matmul %11, %14, %cst_16 {dimension_numbers = #tpu.dot_dimension_numbers<[1], [0], [0], [1], [0, 0, 1, 1], [], []>} : vector<16x128xbf16>, vector<128x128xbf16>, vector<16x128xf32> -> vector<16x128xf32>
      %16 = arith.truncf %13 : vector<16x128xf32> to vector<16x128xbf16>
      %17 = vector.shape_cast %16 : vector<16x128xbf16> to vector<2x8x128xbf16>
      %18 = arith.truncf %15 : vector<16x128xf32> to vector<16x128xbf16>
      %19 = vector.shape_cast %18 : vector<16x128xbf16> to vector<2x8x128xbf16>
      "tpu.trace_start"() <{level = 10 : i32, message = "bqd,bkd->bqk"}> : () -> ()
      %cst_17 = arith.constant dense<0.000000e+00> : vector<2x8x8xf32>
      %20 = tpu.matmul %19, %17, %cst_17 {dimension_numbers = #tpu.dot_dimension_numbers<[2], [2], [1], [1], [0, 0, 0, 1, 1, 1], [0], [0]>} : vector<2x8x128xbf16>, vector<2x8x128xbf16>, vector<2x8x8xf32> -> vector<2x8x8xf32>
      "tpu.trace_stop"() : () -> ()
      %21 = tpu.iota {dimensions = array<i32: 0>} : vector<8x8xi32>
      %22 = tpu.iota {dimensions = array<i32: 1>} : vector<8x8xi32>
      %23 = arith.cmpi sle, %22, %21 : vector<8x8xi32>
      %24 = vector.shape_cast %23 : vector<8x8xi1> to vector<1x8x8xi1>
      %cst_18 = arith.constant 0xFF800000 : f32
      %25 = vector.shape_cast %24 : vector<1x8x8xi1> to vector<1x8x8xi1>
      %26 = vector.broadcast %25 : vector<1x8x8xi1> to vector<2x8x8xi1>
      %27 = vector.broadcast %cst_18 : f32 to vector<2x8x8xf32>
      %28 = arith.select %26, %20, %27 : vector<2x8x8xi1>, vector<2x8x8xf32>
      %cst_19 = arith.constant dense<0xFF800000> : vector<2x8xf32>
      %29 = vector.multi_reduction <maximumf>, %28, %cst_19 [2] : vector<2x8x8xf32> to vector<2x8xf32>
      %30 = vector.shape_cast %29 : vector<2x8xf32> to vector<2x8x1xf32>
      %31 = vector.broadcast %30 : vector<2x8x1xf32> to vector<2x8x8xf32>
      %32 = arith.subf %28, %31 : vector<2x8x8xf32>
      %33 = math.exp %32 : vector<2x8x8xf32>
      %cst_20 = arith.constant dense<0.000000e+00> : vector<2x8xf32>
      %34 = vector.multi_reduction <add>, %33, %cst_20 [2] : vector<2x8x8xf32> to vector<2x8xf32>
      %35 = vector.shape_cast %34 : vector<2x8xf32> to vector<2x8x1xf32>
      %36 = tpu.reciprocal %35 {approx = true} : vector<2x8x1xf32> -> vector<2x8x1xf32>
      %37 = vector.broadcast %36 : vector<2x8x1xf32> to vector<2x8x8xf32>
      %38 = arith.mulf %33, %37 : vector<2x8x8xf32>
      %39 = arith.truncf %38 : vector<2x8x8xf32> to vector<2x8x8xbf16>
      "tpu.trace_start"() <{level = 10 : i32, message = "bqk,bkd->bqd"}> : () -> ()
      %cst_21 = arith.constant dense<0.000000e+00> : vector<2x8x128xf32>
      %40 = tpu.matmul %39, %19, %cst_21 {dimension_numbers = #tpu.dot_dimension_numbers<[2], [1], [1], [2], [0, 0, 0, 1, 1, 2], [0], [0]>} : vector<2x8x8xbf16>, vector<2x8x128xbf16>, vector<2x8x128xf32> -> vector<2x8x128xf32>
      "tpu.trace_stop"() : () -> ()
      %41 = arith.truncf %40 : vector<2x8x128xf32> to vector<2x8x128xbf16>
      %c0_22 = arith.constant 0 : index
      %c0_23 = arith.constant 0 : index
      %c0_24 = arith.constant 0 : index
      %42 = vector.load %arg7[%c0_22, %c0_23, %c0_24] : memref<2x8x128xbf16, #tpu.memory_space<vmem>>, vector<2x8x128xbf16>
      tpu.vector_store %arg7[%c0_22, %c0_23, %c0_24], %41 {strides = array<i32>} : memref<2x8x128xbf16, #tpu.memory_space<vmem>>, vector<2x8x128xbf16>,
    } else {
    }
    %c0 = arith.constant 0 : index
    %c0_1 = arith.constant 0 : index
    %c0_2 = arith.constant 0 : index
    %3 = vector.load %arg7[%c0, %c0_1, %c0_2] : memref<2x8x128xbf16, #tpu.memory_space<vmem>>, vector<2x8x128xbf16>
    %4 = vector.shape_cast %3 : vector<2x8x128xbf16> to vector<16x128xbf16>
    %c0_3 = arith.constant 0 : index
    %c0_4 = arith.constant 0 : index
    %5 = vector.load %arg5[%c0_3, %c0_4] : memref<128x128xbf16, #tpu.memory_space<vmem>>, vector<128x128xbf16>
    %cst = arith.constant dense<0.000000e+00> : vector<16x128xf32>
    %6 = tpu.matmul %4, %5, %cst {dimension_numbers = #tpu.dot_dimension_numbers<[1], [0], [0], [1], [0, 0, 1, 1], [], []>} : vector<16x128xbf16>, vector<128x128xbf16>, vector<16x128xf32> -> vector<16x128xf32>
    %7 = vector.shape_cast %6 : vector<16x128xf32> to vector<2x8x128xf32>
    %8 = arith.truncf %7 : vector<2x8x128xf32> to vector<2x8x128xbf16>
    %c0_5 = arith.constant 0 : index
    %c0_6 = arith.constant 0 : index
    %c0_7 = arith.constant 0 : index
    %9 = vector.load %arg6[%c0_5, %c0_6, %c0_7] : memref<2x8x128xbf16, #tpu.memory_space<vmem>>, vector<2x8x128xbf16>
    tpu.vector_store %arg6[%c0_5, %c0_6, %c0_7], %8 {strides = array<i32>} : memref<2x8x128xbf16, #tpu.memory_space<vmem>>, vector<2x8x128xbf16>,
    return
  }
  func.func @transform_0(%arg0: i32, %arg1: i32) -> (i32, i32, i32) {
    %c0_i32 = arith.constant 0 : i32
    %c0_i32_0 = arith.constant 0 : i32
    %c0_i32_1 = arith.constant 0 : i32
    return %arg0, %c0_i32, %c0_i32_0 : i32, i32, i32
  }
  func.func @transform_1(%arg0: i32, %arg1: i32) -> (i32, i32) {
    %c0_i32 = arith.constant 0 : i32
    %c0_i32_0 = arith.constant 0 : i32
    %c0_i32_1 = arith.constant 0 : i32
    return %c0_i32, %c0_i32_0 : i32, i32
  }
  func.func @transform_2(%arg0: i32, %arg1: i32) -> (i32, i32) {
    %c0_i32 = arith.constant 0 : i32
    %c0_i32_0 = arith.constant 0 : i32
    %c0_i32_1 = arith.constant 0 : i32
    return %c0_i32, %c0_i32_0 : i32, i32
  }
  func.func @transform_3(%arg0: i32, %arg1: i32) -> (i32, i32) {
    %c0_i32 = arith.constant 0 : i32
    %c0_i32_0 = arith.constant 0 : i32
    return %c0_i32, %arg1 : i32, i32
  }
  func.func @transform_4(%arg0: i32, %arg1: i32) -> (i32, i32, i32) {
    %c0_i32 = arith.constant 0 : i32
    %c0_i32_0 = arith.constant 0 : i32
    return %arg0, %c0_i32, %arg1 : i32, i32, i32
  }
}

</mosaic_0001>

<llo_original>
// kernel: tpu_custom_call.1
$region0: #{tpu_custom_call.1}
  #allocation0 [shape = 'u32[]', space=smem, size = 0x4, offset = 0x4, fixed_abs, tag = 'smem constant byte address 0x4 - core index']
  #allocation1 [shape = 'u32[144,128]{1,0:T(1,128)}', space=vmem, size = 0x12000, scoped, tag = 'internal scratch']
  #allocation2 [shape = 'bf16[2,8,128]{2,1,0:T(8,128)(2,1)}', space=vmem, size = 0x1000, scoped, tag = 'scratch operand']
  %s0 = inlined_call_operand.hbm [shape: bf16[4,8,128], index: 0, kind: input, shape index: {}]
  %s1 = inlined_call_operand.hbm [shape: bf16[128,128], index: 1, kind: input, shape index: {}]
  %s2 = inlined_call_operand.hbm [shape: bf16[128,128], index: 2, kind: input, shape index: {}]
  %s3 = inlined_call_operand.hbm [shape: bf16[128,256], index: 3, kind: input, shape index: {}]
  %s4 = inlined_call_operand.hbm [shape: bf16[4,8,256], index: 4, kind: output, shape index: {}]
  %s5 = sld [smem:[#allocation0]]
  $region69: #{tpu_custom_call.1} parent=0
    _
  %s7 = ssub.s32 1, %s5
  %s8 = scalar_select 0, %s7, %s5
  $region1: #{tpu_custom_call.1} parent=0
    #allocation3 [shape = 'u8[8192]{0}', space=vmem, size = 0x2000, scoped, tag = 'input window, operand 0']
    #allocation4 [shape = 's32[2]{0}', space=sflag, size = 0x8, scoped, tag = 'scoped memory for tpu_custom_call.1']
    #allocation5 [shape = 's32[2]{0}', space=sflag, size = 0x8, scoped, tag = 'scoped memory for tpu_custom_call.1']
    #allocation6 [shape = 'u8[32768]{0}', space=vmem, size = 0x8000, scoped, tag = 'input window, operand 1, single buffered']
    #allocation7 [shape = 's32[1]{0}', space=sflag, size = 0x4, scoped, tag = 'scoped memory for tpu_custom_call.1']
    #allocation8 [shape = 'u8[32768]{0}', space=vmem, size = 0x8000, scoped, tag = 'input window, operand 2, single buffered']
    #allocation9 [shape = 'u8[65536]{0}', space=vmem, size = 0x10000, scoped, tag = 'input window, operand 3']
    #allocation10 [shape = 's32[2]{0}', space=sflag, size = 0x8, scoped, tag = 'scoped memory for tpu_custom_call.1']
    #allocation11 [shape = 'u8[8192]{0}', space=vmem, size = 0x2000, scoped, tag = 'output window, operand 0']
    %9 = vsyncpa [#allocation4], 0
    %s10 = scalar_lea.sflag [#allocation4], 1
    %11 = vsyncpa %s10, 0
    %12 = vsyncpa [#allocation7], 0
    %13 = vsyncpa [#allocation10], 0
    %s14 = scalar_lea.sflag [#allocation10], 1
    %15 = vsyncpa %s14, 0
    %16 = vsyncpa [#allocation5], 0
    %s17 = scalar_lea.sflag [#allocation5], 1
    %18 = vsyncpa %s17, 0
    loop: start=0, step=1, limit=6
    $region2: #{tpu_custom_call.1} parent=1 // loop_pre_header
      _
    $region3: #{tpu_custom_call.1} parent=1 // loop_header
      %s20 = sphi 0, %s24
      %p21 = scmp.ge.s32.totalorder %s20, 6
      %s27 = sphi 0, %s39
      %s28 = sphi 0, %s35
      %s29 = sphi 0, %s27
      %s30 = sphi 0, %s28
      %s31 = sphi 0, %s29
      %s32 = sphi 0, %s30
      %s42 = sphi 0, %s44
      %s45 = sphi 0, %s42
      %s46 = sphi 0, %s45
      %s62 = sphi 0, %s46
      %s66 = sphi 0, %s66
      %s68 = sphi 0, %s66
      %s69 = sphi 0, %s68
      %s83 = sphi 0, %s69
      %s87 = sphi 0, %s87
      %s89 = sphi 0, %s87
      %s90 = sphi 0, %s89
      %s104 = sphi 0, %s90
      %s110 = sphi 0, %s112
      %s113 = sphi 0, %s110
      %s114 = sphi 0, %s113
      %s130 = sphi 0, %s114
      %s138 = sphi 0, %s140
      %s141 = sphi 0, %s138
      %s142 = sphi 0, %s141
      %s158 = sphi 0, %s142
    $region4: #{tpu_custom_call.1} parent=1 // loop_header_branch
      %23 = sbr.rel (%p21) target = $region8
    $region5: #{tpu_custom_call.1} parent=1 // loop_body
      %s25 = ssub.s32 %s20, 1
      %s26 = ssub.s32 %s20, 2
      %s33 = sadd.s32 1, %s28
      %p34 = scmp.ge.s32.totalorder %s33, 2
      %s35 = scalar_select %p34, 0, %s33
      %s36 = sadd.s32 1, %s27
      %s37 = scalar_select %p34, %s36, %s27
      %p38 = scmp.ge.s32.totalorder %s37, 2
      %s39 = scalar_select %p38, 0, %s37
      %s40 = ssub.s32 %s27, %s39
      %p41 = scmp.eq.s32.totalorder %s40, 0
      %s43 = sadd.s32 %s42, 1
      %s44 = scalar_select %p41, %s42, %s43
      %p47 = pneg %p41
      %p48 = scmp.eq.s32.totalorder %s20, 3
      %p49 = por %p47, %p48
      %p50 = scmp.ne.s32.totalorder %s42, %s45
      %p51 = scmp.eq.s32.totalorder %s20, 0
      %p52 = por %p50, %p51
      %p53 = scmp.ne.s32.totalorder %s42, %s45
      %p54 = scmp.eq.s32.totalorder %s25, 3
      %p55 = por %p53, %p54
      %p56 = scmp.ne.s32.totalorder %s45, %s46
      %p57 = scmp.eq.s32.totalorder %s25, 0
      %p58 = por %p56, %p57
      %p59 = scmp.ne.s32.totalorder %s45, %s46
      %p60 = scmp.eq.s32.totalorder %s26, 3
      %p61 = por %p59, %p60
      %p63 = scmp.ne.s32.totalorder %s46, %s62
      %p64 = scmp.eq.s32.totalorder %s26, 0
      %p65 = por %p63, %p64
      %s67 = sadd.s32 %s66, 1
      %p70 = scmp.eq.s32.totalorder %s20, 3
      %p71 = scmp.ne.s32.totalorder %s66, %s68
      %p72 = scmp.eq.s32.totalorder %s20, 0
      %p73 = por %p71, %p72
      %p74 = scmp.ne.s32.totalorder %s66, %s68
      %p75 = scmp.eq.s32.totalorder %s25, 3
      %p76 = por %p74, %p75
      %p77 = scmp.ne.s32.totalorder %s68, %s69
      %p78 = scmp.eq.s32.totalorder %s25, 0
      %p79 = por %p77, %p78
      %p80 = scmp.ne.s32.totalorder %s68, %s69
      %p81 = scmp.eq.s32.totalorder %s26, 3
      %p82 = por %p80, %p81
      %p84 = scmp.ne.s32.totalorder %s69, %s83
      %p85 = scmp.eq.s32.totalorder %s26, 0
      %p86 = por %p84, %p85
      %s88 = sadd.s32 %s87, 1
      %p91 = scmp.eq.s32.totalorder %s20, 3
      %p92 = scmp.ne.s32.totalorder %s87, %s89
      %p93 = scmp.eq.s32.totalorder %s20, 0
      %p94 = por %p92, %p93
      %p95 = scmp.ne.s32.totalorder %s87, %s89
      %p96 = scmp.eq.s32.totalorder %s25, 3
      %p97 = por %p95, %p96
      %p98 = scmp.ne.s32.totalorder %s89, %s90
      %p99 = scmp.eq.s32.totalorder %s25, 0
      %p100 = por %p98, %p99
      %p101 = scmp.ne.s32.totalorder %s89, %s90
      %p102 = scmp.eq.s32.totalorder %s26, 3
      %p103 = por %p101, %p102
      %p105 = scmp.ne.s32.totalorder %s90, %s104
      %p106 = scmp.eq.s32.totalorder %s26, 0
      %p107 = por %p105, %p106
      %s108 = ssub.s32 %s28, %s35
      %p109 = scmp.eq.s32.totalorder %s108, 0
      %s111 = sadd.s32 %s110, 1
      %s112 = scalar_select %p109, %s110, %s111
      %p115 = pneg %p109
      %p116 = scmp.eq.s32.totalorder %s20, 3
      %p117 = por %p115, %p116
      %p118 = scmp.ne.s32.totalorder %s110, %s113
      %p119 = scmp.eq.s32.totalorder %s20, 0
      %p120 = por %p118, %p119
      %p121 = scmp.ne.s32.totalorder %s110, %s113
      %p122 = scmp.eq.s32.totalorder %s25, 3
      %p123 = por %p121, %p122
      %p124 = scmp.ne.s32.totalorder %s113, %s114
      %p125 = scmp.eq.s32.totalorder %s25, 0
      %p126 = por %p124, %p125
      %p127 = scmp.ne.s32.totalorder %s113, %s114
      %p128 = scmp.eq.s32.totalorder %s26, 3
      %p129 = por %p127, %p128
      %p131 = scmp.ne.s32.totalorder %s114, %s130
      %p132 = scmp.eq.s32.totalorder %s26, 0
      %p133 = por %p131, %p132
      %s134 = ssub.s32 %s27, %s39
      %s135 = ssub.s32 %s28, %s35
      %s136 = sor.u32 %s134, %s135
      %p137 = scmp.eq.s32.totalorder %s136, 0
      %s139 = sadd.s32 %s138, 1
      %s140 = scalar_select %p137, %s138, %s139
      %p143 = pneg %p137
      %p144 = scmp.eq.s32.totalorder %s20, 3
      %p145 = por %p143, %p144
      %p146 = scmp.ne.s32.totalorder %s138, %s141
      %p147 = scmp.eq.s32.totalorder %s20, 0
      %p148 = por %p146, %p147
      %p149 = scmp.ne.s32.totalorder %s138, %s141
      %p150 = scmp.eq.s32.totalorder %s25, 3
      %p151 = por %p149, %p150
      %p152 = scmp.ne.s32.totalorder %s141, %s142
      %p153 = scmp.eq.s32.totalorder %s25, 0
      %p154 = por %p152, %p153
      %p155 = scmp.ne.s32.totalorder %s141, %s142
      %p156 = scmp.eq.s32.totalorder %s26, 3
      %p157 = por %p155, %p156
      %p159 = scmp.ne.s32.totalorder %s142, %s158
      %p160 = scmp.eq.s32.totalorder %s26, 0
      %p161 = por %p159, %p160
      %p162 = scmp.le.s32.totalorder 1, %s20
      %p163 = scmp.lt.s32.totalorder %s20, 5
      %p164 = pnand %p162, %p163
      %p165 = pneg %p164
      // Predicated region
      $region9: #{tpu_custom_call.1} parent=5 // pred_check
        _
      $region10: #{tpu_custom_call.1} parent=5 // pred_check_branch
        %167 = sbr.rel (%p164) target = $region12
      $region11: #{tpu_custom_call.1} parent=5 // pred_region
        %s168 = ssub.s32 %s20, 1
        // Predicated region
        $region13: #{tpu_custom_call.1} parent=11 // pred_check
          %p169 = pneg %p79
        $region14: #{tpu_custom_call.1} parent=11 // pred_check_branch
          %171 = sbr.rel (%p169) target = $region16
        $region15: #{tpu_custom_call.1} parent=11 // pred_region
          %s173 = ssub.s32 1024, 1024
          %174 = vsyncadd [#allocation7], %s173
          %s175 = sshll.u32 [#allocation6], 4
          %s176 = int_to_ptr.vmem [resolvable:$true] %s175
          %181 = dma.hbm_to_vmem [thread:$0]  %s1, 1024, %s176, [#allocation7], 64, 64, 4
        $region16: #{tpu_custom_call.1} parent=11 // pred_fallthru
          _
        // Predicated region
        $region17: #{tpu_custom_call.1} parent=11 // pred_check
          %p182 = pneg %p100
        $region18: #{tpu_custom_call.1} parent=11 // pred_check_branch
          %184 = sbr.rel (%p182) target = $region20
        $region19: #{tpu_custom_call.1} parent=11 // pred_region
          %s186 = ssub.s32 1024, 1024
          %187 = vsyncadd [#allocation7], %s186
          %s188 = sshll.u32 [#allocation8], 4
          %s189 = int_to_ptr.vmem [resolvable:$true] %s188
          %194 = dma.hbm_to_vmem [thread:$0]  %s2, 1024, %s189, [#allocation7], 64, 64, 4
        $region20: #{tpu_custom_call.1} parent=11 // pred_fallthru
          _
      $region12: #{tpu_custom_call.1} parent=5 // pred_fallthru
        _
      %p195 = scmp.lt.s32.totalorder %s20, 4
      // Predicated region
      $region21: #{tpu_custom_call.1} parent=5 // pred_check
        %p196 = pneg %p195
      $region22: #{tpu_custom_call.1} parent=5 // pred_check_branch
        %198 = sbr.rel (%p196) target = $region24
      $region23: #{tpu_custom_call.1} parent=5 // pred_region
        // Predicated region
        $region25: #{tpu_custom_call.1} parent=23 // pred_check
          %p199 = pneg %p52
        $region26: #{tpu_custom_call.1} parent=23 // pred_check_branch
          %201 = sbr.rel (%p199) target = $region28
        $region27: #{tpu_custom_call.1} parent=23 // pred_region
          %s202 = sand.u32 %s42, 1
          %s203 = scalar_lea.sflag [#allocation4], %s202
          %s204 = sand.u32 %s42, 1
          %s205 = smul.addr %s204, 8
          %s206 = scalar_lea.vmem [#allocation3], %s205
          %s207 = smul.u32 2, %s27
          %s209 = ssub.s32 128, 128
          %210 = vsyncadd %s203, %s209
          %s211 = smul.addr %s207, 64
          %s212 = scalar_lea.hbm %s0, %s211
          %s213 = sshll.u32 %s206, 4
          %s214 = int_to_ptr.vmem [resolvable:$true] %s213
          %219 = dma.hbm_to_vmem [thread:$0]  %s212, 128, %s214, %s203, 64, 64, 4
        $region28: #{tpu_custom_call.1} parent=23 // pred_fallthru
          _
        // Predicated region
        $region29: #{tpu_custom_call.1} parent=23 // pred_check
          %p220 = pneg %p120
        $region30: #{tpu_custom_call.1} parent=23 // pred_check_branch
          %222 = sbr.rel (%p220) target = $region32
        $region31: #{tpu_custom_call.1} parent=23 // pred_region
          %s223 = sand.u32 %s110, 1
          %s224 = scalar_lea.sflag [#allocation10], %s223
          %s225 = sand.u32 %s110, 1
          %s226 = smul.addr %s225, 64
          %s227 = scalar_lea.vmem [#allocation9], %s226
          %s229 = ssub.s32 1024, 1024
          %230 = vsyncadd %s224, %s229
          %s231 = smul.addr %s28, 64
          %s232 = scalar_lea.hbm %s3, %s231
          %s233 = sshll.u32 %s227, 4
          %s234 = int_to_ptr.vmem [resolvable:$true] %s233
          %239 = dma.hbm_to_vmem [thread:$0]  %s232, 1024, %s234, %s224, 128, 64, 4
        $region32: #{tpu_custom_call.1} parent=23 // pred_fallthru
          _
      $region24: #{tpu_custom_call.1} parent=5 // pred_fallthru
        _
      %p240 = scmp.le.s32.totalorder 1, %s20
      %p241 = scmp.lt.s32.totalorder %s20, 5
      %p242 = pnand %p240, %p241
      %p243 = pneg %p242
      // Predicated region
      $region33: #{tpu_custom_call.1} parent=5 // pred_check
        _
      $region34: #{tpu_custom_call.1} parent=5 // pred_check_branch
        %245 = sbr.rel (%p242) target = $region36
      $region35: #{tpu_custom_call.1} parent=5 // pred_region
        %s246 = ssub.s32 %s20, 1
        %s247 = sand.u32 %s45, 1
        %s248 = scalar_lea.sflag [#allocation4], %s247
        %s249 = sand.u32 %s45, 1
        %s250 = smul.addr %s249, 8
        %s251 = scalar_lea.vmem [#allocation3], %s250
        // Predicated region
        $region37: #{tpu_custom_call.1} parent=35 // pred_check
          %p252 = pneg %p58
        $region38: #{tpu_custom_call.1} parent=35 // pred_check_branch
          %254 = sbr.rel (%p252) target = $region40
        $region39: #{tpu_custom_call.1} parent=35 // pred_region
          %255 = dma.done %s248, 128
        $region40: #{tpu_custom_call.1} parent=35 // pred_fallthru
          _
        // Predicated region
        $region41: #{tpu_custom_call.1} parent=35 // pred_check
          %p256 = pneg %p79
        $region42: #{tpu_custom_call.1} parent=35 // pred_check_branch
          %258 = sbr.rel (%p256) target = $region44
        $region43: #{tpu_custom_call.1} parent=35 // pred_region
          %259 = dma.done [#allocation7], 1024
        $region44: #{tpu_custom_call.1} parent=35 // pred_fallthru
          _
        // Predicated region
        $region45: #{tpu_custom_call.1} parent=35 // pred_check
          %p260 = pneg %p100
        $region46: #{tpu_custom_call.1} parent=35 // pred_check_branch
          %262 = sbr.rel (%p260) target = $region48
        $region47: #{tpu_custom_call.1} parent=35 // pred_region
          %263 = dma.done [#allocation7], 1024
        $region48: #{tpu_custom_call.1} parent=35 // pred_fallthru
          _
        %s264 = sand.u32 %s113, 1
        %s265 = scalar_lea.sflag [#allocation10], %s264
        %s266 = sand.u32 %s113, 1
        %s267 = smul.addr %s266, 64
        %s268 = scalar_lea.vmem [#allocation9], %s267
        // Predicated region
        $region49: #{tpu_custom_call.1} parent=35 // pred_check
          %p269 = pneg %p126
        $region50: #{tpu_custom_call.1} parent=35 // pred_check_branch
          %271 = sbr.rel (%p269) target = $region52
        $region51: #{tpu_custom_call.1} parent=35 // pred_region
          %272 = dma.done %s265, 1024
        $region52: #{tpu_custom_call.1} parent=35 // pred_fallthru
          _
        %s273 = sand.u32 %s45, 1
        %s274 = scalar_lea.sflag [#allocation4], %s273
        %s275 = sand.u32 %s45, 1
        %s276 = smul.addr %s275, 8
        %s277 = scalar_lea.vmem [#allocation3], %s276
        %p278 = pneg %p58
        %p279 = pneg %p55
        %p280 = pneg %p79
        %p281 = pneg %p76
        %p282 = pneg %p100
        %p283 = pneg %p97
        %s284 = sand.u32 %s113, 1
        %s285 = scalar_lea.sflag [#allocation10], %s284
        %s286 = sand.u32 %s113, 1
        %s287 = smul.addr %s286, 64
        %s288 = scalar_lea.vmem [#allocation9], %s287
        %p289 = pneg %p126
        %p290 = pneg %p123
        %p291 = pneg %p154
        %p292 = pneg %p151
        %s293 = sand.u32 %s141, 1
        %s294 = scalar_lea.sflag [#allocation5], %s293
        %s295 = sand.u32 %s141, 1
        %s296 = smul.addr %s295, 8
        %s297 = scalar_lea.vmem [#allocation11], %s296
        %s298 = smul.u32 2, %s29
        %s299 = smul.u32 2, %s29
        %p301 = scmp.eq.s32.totalorder %s30, 0
        // Predicated region
        $region53: #{tpu_custom_call.1} parent=35 // pred_check
          %p302 = pneg %p301
        $region54: #{tpu_custom_call.1} parent=35 // pred_check_branch
          %304 = sbr.rel (%p302) target = $region56
        $region55: #{tpu_custom_call.1} parent=35 // pred_region
          %v305 = vld [vmem:[%s251] sm:$0xf]
          %v306 = vld [vmem:[%s251 + $0x4] sm:$0xf]
          %v307 = vld [vmem:[#allocation6] sm:$0xf]
          %v308 = vld [vmem:[#allocation6 + $0x4] sm:$0xf]
          %v309 = vld [vmem:[#allocation6 + $0x8] sm:$0xf]
          %v310 = vld [vmem:[#allocation6 + $0xc] sm:$0xf]
          %v311 = vld [vmem:[#allocation6 + $0x10] sm:$0xf]
          %v312 = vld [vmem:[#allocation6 + $0x14] sm:$0xf]
          %v313 = vld [vmem:[#allocation6 + $0x18] sm:$0xf]
          %v314 = vld [vmem:[#allocation6 + $0x1c] sm:$0xf]
          %v315 = vld [vmem:[#allocation6 + $0x20] sm:$0xf]
          %v316 = vld [vmem:[#allocation6 + $0x24] sm:$0xf]
          %v317 = vld [vmem:[#allocation6 + $0x28] sm:$0xf]
          %v318 = vld [vmem:[#allocation6 + $0x2c] sm:$0xf]
          %v319 = vld [vmem:[#allocation6 + $0x30] sm:$0xf]
          %v320 = vld [vmem:[#allocation6 + $0x34] sm:$0xf]
          %v321 = vld [vmem:[#allocation6 + $0x38] sm:$0xf]
          %v322 = vld [vmem:[#allocation6 + $0x3c] sm:$0xf]
          %v325 = vunpack.c.l.b16 %v305
          %v326 = vunpack.c.l.b16 %v306
          %v327 = vpack.c.b16 %v326, %v325
          %v345 = vunpack.c.l.b16 %v307
          %v346 = vunpack.c.l.b16 %v308
          %v347 = vunpack.c.l.b16 %v309
          %v348 = vunpack.c.l.b16 %v310
          %v349 = vunpack.c.l.b16 %v311
          %v350 = vunpack.c.l.b16 %v312
          %v351 = vunpack.c.l.b16 %v313
          %v352 = vunpack.c.l.b16 %v314
          %v353 = vunpack.c.l.b16 %v315
          %v354 = vunpack.c.l.b16 %v316
          %v355 = vunpack.c.l.b16 %v317
          %v356 = vunpack.c.l.b16 %v318
          %v357 = vunpack.c.l.b16 %v319
          %v358 = vunpack.c.l.b16 %v320
          %v359 = vunpack.c.l.b16 %v321
          %v360 = vunpack.c.l.b16 %v322
          %v361 = vpack.c.b16 %v346, %v345
          %v362 = vpack.c.b16 %v348, %v347
          %v363 = vpack.c.b16 %v350, %v349
          %v364 = vpack.c.b16 %v352, %v351
          %v365 = vpack.c.b16 %v354, %v353
          %v366 = vpack.c.b16 %v356, %v355
          %v367 = vpack.c.b16 %v358, %v357
          %v368 = vpack.c.b16 %v360, %v359
          %377 = vmatprep.subr.bf16.mxu0 0
          %378 = vmatpush1.bf16.msra.mxu0 %v361
          %379 = vmatprep.subr.bf16.mxu0 0
          %380 = vmatpush1.bf16.msra.mxu0 %v362
          %381 = vmatprep.subr.bf16.mxu0 0
          %382 = vmatpush1.bf16.msra.mxu0 %v363
          %383 = vmatprep.subr.bf16.mxu0 0
          %384 = vmatpush1.bf16.msra.mxu0 %v364
          %385 = vmatprep.subr.bf16.mxu0 0
          %386 = vmatpush1.bf16.msra.mxu0 %v365
          %387 = vmatprep.subr.bf16.mxu0 0
          %388 = vmatpush1.bf16.msra.mxu0 %v366
          %389 = vmatprep.subr.bf16.mxu0 0
          %390 = vmatpush1.bf16.msra.mxu0 %v367
          %391 = vmatprep.subr.bf16.mxu0 0
          %392 = vmatpush1.bf16.msra.mxu0 %v368
          %393 = vmatprep.subr.bf16.mxu0 0
          %394 = vmatpush1.bf16.msra.mxu0 0
          %395 = vmatprep.subr.bf16.mxu0 0
          %396 = vmatpush1.bf16.msra.mxu0 0
          %397 = vmatprep.subr.bf16.mxu0 0
          %398 = vmatpush1.bf16.msra.mxu0 0
          %399 = vmatprep.subr.bf16.mxu0 0
          %400 = vmatpush1.bf16.msra.mxu0 0
          %401 = vmatprep.subr.bf16.mxu0 0
          %402 = vmatpush1.bf16.msra.mxu0 0
          %403 = vmatprep.subr.bf16.mxu0 0
          %404 = vmatpush1.bf16.msra.mxu0 0
          %405 = vmatprep.subr.bf16.mxu0 0
          %406 = vmatpush1.bf16.msra.mxu0 0
          %407 = vmatprep.subr.bf16.mxu0 0
          %408 = vmatpush1.bf16.msra.mxu0 0
          %409 = vmatprep.mubr.bf16.mxu0 0
          %410 = vmatmul.mubr.bf16.gmra.mrb[0].mxu0 %v327
          %v411 = vpop.f32.mrb[0].mxu0
          %v412 = vadd.f32 0.0, %v411
          %v413 = vpop.f32.mrb[0].mxu0
          %v414 = vpop.f32.mrb[0].mxu0
          %v415 = vadd.f32 0.0, %v414
          %v416 = vpop.f32.mrb[0].mxu0
          %417 = vdwg.mxu0
          %v418 = vld [vmem:[#allocation8] sm:$0xf]
          %v419 = vld [vmem:[#allocation8 + $0x4] sm:$0xf]
          %v420 = vld [vmem:[#allocation8 + $0x8] sm:$0xf]
          %v421 = vld [vmem:[#allocation8 + $0xc] sm:$0xf]
          %v422 = vld [vmem:[#allocation8 + $0x10] sm:$0xf]
          %v423 = vld [vmem:[#allocation8 + $0x14] sm:$0xf]
          %v424 = vld [vmem:[#allocation8 + $0x18] sm:$0xf]
          %v425 = vld [vmem:[#allocation8 + $0x1c] sm:$0xf]
          %v426 = vld [vmem:[#allocation8 + $0x20] sm:$0xf]
          %v427 = vld [vmem:[#allocation8 + $0x24] sm:$0xf]
          %v428 = vld [vmem:[#allocation8 + $0x28] sm:$0xf]
          %v429 = vld [vmem:[#allocation8 + $0x2c] sm:$0xf]
          %v430 = vld [vmem:[#allocation8 + $0x30] sm:$0xf]
          %v431 = vld [vmem:[#allocation8 + $0x34] sm:$0xf]
          %v432 = vld [vmem:[#allocation8 + $0x38] sm:$0xf]
          %v433 = vld [vmem:[#allocation8 + $0x3c] sm:$0xf]
          %v450 = vunpack.c.l.b16 %v418
          %v451 = vunpack.c.l.b16 %v419
          %v452 = vunpack.c.l.b16 %v420
          %v453 = vunpack.c.l.b16 %v421
          %v454 = vunpack.c.l.b16 %v422
          %v455 = vunpack.c.l.b16 %v423
          %v456 = vunpack.c.l.b16 %v424
          %v457 = vunpack.c.l.b16 %v425
          %v458 = vunpack.c.l.b16 %v426
          %v459 = vunpack.c.l.b16 %v427
          %v460 = vunpack.c.l.b16 %v428
          %v461 = vunpack.c.l.b16 %v429
          %v462 = vunpack.c.l.b16 %v430
          %v463 = vunpack.c.l.b16 %v431
          %v464 = vunpack.c.l.b16 %v432
          %v465 = vunpack.c.l.b16 %v433
          %v466 = vpack.c.b16 %v451, %v450
          %v467 = vpack.c.b16 %v453, %v452
          %v468 = vpack.c.b16 %v455, %v454
          %v469 = vpack.c.b16 %v457, %v456
          %v470 = vpack.c.b16 %v459, %v458
          %v471 = vpack.c.b16 %v461, %v460
          %v472 = vpack.c.b16 %v463, %v462
          %v473 = vpack.c.b16 %v465, %v464
          %482 = vmatprep.subr.bf16.mxu0 0
          %483 = vmatpush1.bf16.msra.mxu0 %v466
          %484 = vmatprep.subr.bf16.mxu0 0
          %485 = vmatpush1.bf16.msra.mxu0 %v467
          %486 = vmatprep.subr.bf16.mxu0 0
          %487 = vmatpush1.bf16.msra.mxu0 %v468
          %488 = vmatprep.subr.bf16.mxu0 0
          %489 = vmatpush1.bf16.msra.mxu0 %v469
          %490 = vmatprep.subr.bf16.mxu0 0
          %491 = vmatpush1.bf16.msra.mxu0 %v470
          %492 = vmatprep.subr.bf16.mxu0 0
          %493 = vmatpush1.bf16.msra.mxu0 %v471
          %494 = vmatprep.subr.bf16.mxu0 0
          %495 = vmatpush1.bf16.msra.mxu0 %v472
          %496 = vmatprep.subr.bf16.mxu0 0
          %497 = vmatpush1.bf16.msra.mxu0 %v473
          %498 = vmatprep.subr.bf16.mxu0 0
          %499 = vmatpush1.bf16.msra.mxu0 0
          %500 = vmatprep.subr.bf16.mxu0 0
          %501 = vmatpush1.bf16.msra.mxu0 0
          %502 = vmatprep.subr.bf16.mxu0 0
          %503 = vmatpush1.bf16.msra.mxu0 0
          %504 = vmatprep.subr.bf16.mxu0 0
          %505 = vmatpush1.bf16.msra.mxu0 0
          %506 = vmatprep.subr.bf16.mxu0 0
          %507 = vmatpush1.bf16.msra.mxu0 0
          %508 = vmatprep.subr.bf16.mxu0 0
          %509 = vmatpush1.bf16.msra.mxu0 0
          %510 = vmatprep.subr.bf16.mxu0 0
          %511 = vmatpush1.bf16.msra.mxu0 0
          %512 = vmatprep.subr.bf16.mxu0 0
          %513 = vmatpush1.bf16.msra.mxu0 0
          %514 = vmatprep.mubr.bf16.mxu0 0
          %515 = vmatmul.mubr.bf16.gmra.mrb[0].mxu0 %v327
          %v516 = vpop.f32.mrb[0].mxu0
          %v517 = vadd.f32 0.0, %v516
          %v518 = vpop.f32.mrb[0].mxu0
          %v519 = vpop.f32.mrb[0].mxu0
          %v520 = vadd.f32 0.0, %v519
          %v521 = vpop.f32.mrb[0].mxu0
          %522 = vdwg.mxu0
          %v523 = vpack.c.bf16 %v415, %v412
          %v525 = vunpack.c.l.b16 %v523
          %v526 = vunpack.c.h.b16 %v523
          %v527 = vpack.c.b16 %v525, %v525
          %v528 = vpack.c.b16 %v526, %v526
          %v531 = vpack.c.bf16 %v520, %v517
          %v533 = vunpack.c.l.b16 %v531
          %v534 = vunpack.c.h.b16 %v531
          %v535 = vpack.c.b16 %v533, %v533
          %v536 = vpack.c.b16 %v534, %v534
          %539 = vmatprep.subr.bf16.mxu0 0
          %540 = vmatpush1.bf16.xpose.msra.mxu0 %v527
          %541 = vmatprep.subr.bf16.mxu0 0
          %542 = vmatpush1.bf16.xpose.msra.mxu0 0
          %543 = vmatprep.subr.bf16.mxu0 0
          %544 = vmatpush1.bf16.xpose.msra.mxu0 0
          %545 = vmatprep.subr.bf16.mxu0 0
          %546 = vmatpush1.bf16.xpose.msra.mxu0 0
          %547 = vmatprep.subr.bf16.mxu0 0
          %548 = vmatpush1.bf16.xpose.msra.mxu0 0
          %549 = vmatprep.subr.bf16.mxu0 0
          %550 = vmatpush1.bf16.xpose.msra.mxu0 0
          %551 = vmatprep.subr.bf16.mxu0 0
          %552 = vmatpush1.bf16.xpose.msra.mxu0 0
          %553 = vmatprep.subr.bf16.mxu0 0
          %554 = vmatpush1.bf16.xpose.msra.mxu0 0
          %555 = vmatprep.subr.bf16.mxu0 0
          %556 = vmatpush1.bf16.xpose.msra.mxu0 0
          %557 = vmatprep.subr.bf16.mxu0 0
          %558 = vmatpush1.bf16.xpose.msra.mxu0 0
          %559 = vmatprep.subr.bf16.mxu0 0
          %560 = vmatpush1.bf16.xpose.msra.mxu0 0
          %561 = vmatprep.subr.bf16.mxu0 0
          %562 = vmatpush1.bf16.xpose.msra.mxu0 0
          %563 = vmatprep.subr.bf16.mxu0 0
          %564 = vmatpush1.bf16.xpose.msra.mxu0 0
          %565 = vmatprep.subr.bf16.mxu0 0
          %566 = vmatpush1.bf16.xpose.msra.mxu0 0
          %567 = vmatprep.subr.bf16.mxu0 0
          %568 = vmatpush1.bf16.xpose.msra.mxu0 0
          %569 = vmatprep.subr.bf16.mxu0 0
          %570 = vmatpush1.bf16.xpose.msra.mxu0 0
          %571 = vmatprep.mubr.bf16.mxu0 0
          %572 = vmatmul.mubr.bf16.gmra.mrb[0].mxu0 %v535
          %v573 = vpop.f32.mrb[0].mxu0
          %v574 = vadd.f32 0.0, %v573
          %v575 = vpop.f32.mrb[0].mxu0
          %v576 = vpop.f32.mrb[0].mxu0
          %v577 = vpop.f32.mrb[0].mxu0
          %578 = vdwg.mxu0
          %579 = vmatprep.subr.bf16.mxu0 0
          %580 = vmatpush1.bf16.xpose.msra.mxu0 %v528
          %581 = vmatprep.subr.bf16.mxu0 0
          %582 = vmatpush1.bf16.xpose.msra.mxu0 0
          %583 = vmatprep.subr.bf16.mxu0 0
          %584 = vmatpush1.bf16.xpose.msra.mxu0 0
          %585 = vmatprep.subr.bf16.mxu0 0
          %586 = vmatpush1.bf16.xpose.msra.mxu0 0
          %587 = vmatprep.subr.bf16.mxu0 0
          %588 = vmatpush1.bf16.xpose.msra.mxu0 0
          %589 = vmatprep.subr.bf16.mxu0 0
          %590 = vmatpush1.bf16.xpose.msra.mxu0 0
          %591 = vmatprep.subr.bf16.mxu0 0
          %592 = vmatpush1.bf16.xpose.msra.mxu0 0
          %593 = vmatprep.subr.bf16.mxu0 0
          %594 = vmatpush1.bf16.xpose.msra.mxu0 0
          %595 = vmatprep.subr.bf16.mxu0 0
          %596 = vmatpush1.bf16.xpose.msra.mxu0 0
          %597 = vmatprep.subr.bf16.mxu0 0
          %598 = vmatpush1.bf16.xpose.msra.mxu0 0
          %599 = vmatprep.subr.bf16.mxu0 0
          %600 = vmatpush1.bf16.xpose.msra.mxu0 0
          %601 = vmatprep.subr.bf16.mxu0 0
          %602 = vmatpush1.bf16.xpose.msra.mxu0 0
          %603 = vmatprep.subr.bf16.mxu0 0
          %604 = vmatpush1.bf16.xpose.msra.mxu0 0
          %605 = vmatprep.subr.bf16.mxu0 0
          %606 = vmatpush1.bf16.xpose.msra.mxu0 0
          %607 = vmatprep.subr.bf16.mxu0 0
          %608 = vmatpush1.bf16.xpose.msra.mxu0 0
          %609 = vmatprep.subr.bf16.mxu0 0
          %610 = vmatpush1.bf16.xpose.msra.mxu0 0
          %611 = vmatprep.mubr.bf16.mxu0 0
          %612 = vmatmul.mubr.bf16.gmra.mrb[0].mxu0 %v536
          %v613 = vpop.f32.mrb[0].mxu0
          %v614 = vadd.f32 0.0, %v613
          %v615 = vpop.f32.mrb[0].mxu0
          %v616 = vpop.f32.mrb[0].mxu0
          %v617 = vpop.f32.mrb[0].mxu0
          %618 = vdwg.mxu0
          %v619 = vlaneseq
          %v620 = vshrl.u32 %v619, 7
          %v621 = vlaneseq
          %v622 = vand.u32 %v621, 127
          %vm623 = vcmp.le.s32.totalorder %v622, %v620
          %v624 = vsel %vm623, 1, 0
          %vm625 = vcmp.eq.s32.totalorder %v624, 1
          %v626 = vsel %vm625, %v574, -inf
          %v627 = vsel %vm625, %v614, -inf
          %vm628 = vcmask 64512
          %v629 = vsel %vm628, %v626, -inf
          %630 = vmax.xlane.f32.xlu0 %v629
          %v631 = vpop.xlane.xlu0 %630
          %v632 = vsel %vm628, %v627, -inf
          %633 = vmax.xlane.f32.xlu0 %v632
          %v634 = vpop.xlane.xlu0 %633
          %v635 = vsub.f32 %v626, %v631
          %v636 = vsub.f32 %v627, %v634
          %v637 = vmul.f32 %v635, 1.442695
          %v638 = vpow.pop %v637
          %v639 = vmul.f32 %v636, 1.442695
          %v640 = vpow.pop %v639
          %v641 = vsel %vm628, %v638, 0.0
          %642 = vadd.xlane.f32.xlu0 %v641
          %v643 = vpop.xlane.xlu0 %642
          %v644 = vsel %vm628, %v640, 0.0
          %645 = vadd.xlane.f32.xlu0 %v644
          %v646 = vpop.xlane.xlu0 %645
          %v647 = vrcp.pop %v643
          %v648 = vrcp.pop %v646
          %v649 = vmul.f32 %v638, %v647
          %v650 = vmul.f32 %v640, %v648
          %v651 = vpack.c.bf16 %v649, %v649
          %v652 = vpack.c.bf16 %v650, %v650
          %v654 = vsel %vm628, %v651, 0
          %vm656 = vcmask 1043456
          %v658 = vsel %vm656, %v535, 0
          %660 = vmatprep.subr.bf16.mxu0 0
          %661 = vmatpush1.bf16.msra.mxu0 %v658
          %662 = vmatprep.subr.bf16.mxu0 0
          %663 = vmatpush1.bf16.msra.mxu0 0
          %664 = vmatprep.subr.bf16.mxu0 0
          %665 = vmatpush1.bf16.msra.mxu0 0
          %666 = vmatprep.subr.bf16.mxu0 0
          %667 = vmatpush1.bf16.msra.mxu0 0
          %668 = vmatprep.subr.bf16.mxu0 0
          %669 = vmatpush1.bf16.msra.mxu0 0
          %670 = vmatprep.subr.bf16.mxu0 0
          %671 = vmatpush1.bf16.msra.mxu0 0
          %672 = vmatprep.subr.bf16.mxu0 0
          %673 = vmatpush1.bf16.msra.mxu0 0
          %674 = vmatprep.subr.bf16.mxu0 0
          %675 = vmatpush1.bf16.msra.mxu0 0
          %676 = vmatprep.subr.bf16.mxu0 0
          %677 = vmatpush1.bf16.msra.mxu0 0
          %678 = vmatprep.subr.bf16.mxu0 0
          %679 = vmatpush1.bf16.msra.mxu0 0
          %680 = vmatprep.subr.bf16.mxu0 0
          %681 = vmatpush1.bf16.msra.mxu0 0
          %682 = vmatprep.subr.bf16.mxu0 0
          %683 = vmatpush1.bf16.msra.mxu0 0
          %684 = vmatprep.subr.bf16.mxu0 0
          %685 = vmatpush1.bf16.msra.mxu0 0
          %686 = vmatprep.subr.bf16.mxu0 0
          %687 = vmatpush1.bf16.msra.mxu0 0
          %688 = vmatprep.subr.bf16.mxu0 0
          %689 = vmatpush1.bf16.msra.mxu0 0
          %690 = vmatprep.subr.bf16.mxu0 0
          %691 = vmatpush1.bf16.msra.mxu0 0
          %692 = vmatprep.mubr.bf16.mxu0 0
          %693 = vmatmul.mubr.bf16.gmra.mrb[0].mxu0 %v654
          %v694 = vpop.f32.mrb[0].mxu0
          %v695 = vadd.f32 0.0, %v694
          %v696 = vpop.f32.mrb[0].mxu0
          %v697 = vpop.f32.mrb[0].mxu0
          %v698 = vpop.f32.mrb[0].mxu0
          %699 = vdwg.mxu0
          %v701 = vsel %vm628, %v652, 0
          %v704 = vsel %vm656, %v536, 0
          %706 = vmatprep.subr.bf16.mxu0 0
          %707 = vmatpush1.bf16.msra.mxu0 %v704
          %708 = vmatprep.subr.bf16.mxu0 0
          %709 = vmatpush1.bf16.msra.mxu0 0
          %710 = vmatprep.subr.bf16.mxu0 0
          %711 = vmatpush1.bf16.msra.mxu0 0
          %712 = vmatprep.subr.bf16.mxu0 0
          %713 = vmatpush1.bf16.msra.mxu0 0
          %714 = vmatprep.subr.bf16.mxu0 0
          %715 = vmatpush1.bf16.msra.mxu0 0
          %716 = vmatprep.subr.bf16.mxu0 0
          %717 = vmatpush1.bf16.msra.mxu0 0
          %718 = vmatprep.subr.bf16.mxu0 0
          %719 = vmatpush1.bf16.msra.mxu0 0
          %720 = vmatprep.subr.bf16.mxu0 0
          %721 = vmatpush1.bf16.msra.mxu0 0
          %722 = vmatprep.subr.bf16.mxu0 0
          %723 = vmatpush1.bf16.msra.mxu0 0
          %724 = vmatprep.subr.bf16.mxu0 0
          %725 = vmatpush1.bf16.msra.mxu0 0
          %726 = vmatprep.subr.bf16.mxu0 0
          %727 = vmatpush1.bf16.msra.mxu0 0
          %728 = vmatprep.subr.bf16.mxu0 0
          %729 = vmatpush1.bf16.msra.mxu0 0
          %730 = vmatprep.subr.bf16.mxu0 0
          %731 = vmatpush1.bf16.msra.mxu0 0
          %732 = vmatprep.subr.bf16.mxu0 0
          %733 = vmatpush1.bf16.msra.mxu0 0
          %734 = vmatprep.subr.bf16.mxu0 0
          %735 = vmatpush1.bf16.msra.mxu0 0
          %736 = vmatprep.subr.bf16.mxu0 0
          %737 = vmatpush1.bf16.msra.mxu0 0
          %738 = vmatprep.mubr.bf16.mxu0 0
          %739 = vmatmul.mubr.bf16.gmra.mrb[0].mxu0 %v701
          %v740 = vpop.f32.mrb[0].mxu0
          %v741 = vadd.f32 0.0, %v740
          %v742 = vpop.f32.mrb[0].mxu0
          %v743 = vpop.f32.mrb[0].mxu0
          %v744 = vpop.f32.mrb[0].mxu0
          %745 = vdwg.mxu0
          %v746 = vpack.c.bf16 %v695, %v695
          %v747 = vpack.c.bf16 %v741, %v741
          %748 = vst [vmem:[#allocation2] sm:$0xf] %v746
          %749 = vst [vmem:[#allocation2 + $0x4] sm:$0xf] %v747
        $region56: #{tpu_custom_call.1} parent=35 // pred_fallthru
          _
        %v750 = vld [vmem:[#allocation2] sm:$0xf]
        %v751 = vld [vmem:[#allocation2 + $0x4] sm:$0xf]
        %v752 = vld [vmem:[%s268] sm:$0xf]
        %v753 = vld [vmem:[%s268 + $0x4] sm:$0xf]
        %v754 = vld [vmem:[%s268 + $0x8] sm:$0xf]
        %v755 = vld [vmem:[%s268 + $0xc] sm:$0xf]
        %v756 = vld [vmem:[%s268 + $0x10] sm:$0xf]
        %v757 = vld [vmem:[%s268 + $0x14] sm:$0xf]
        %v758 = vld [vmem:[%s268 + $0x18] sm:$0xf]
        %v759 = vld [vmem:[%s268 + $0x1c] sm:$0xf]
        %v760 = vld [vmem:[%s268 + $0x20] sm:$0xf]
        %v761 = vld [vmem:[%s268 + $0x24] sm:$0xf]
        %v762 = vld [vmem:[%s268 + $0x28] sm:$0xf]
        %v763 = vld [vmem:[%s268 + $0x2c] sm:$0xf]
        %v764 = vld [vmem:[%s268 + $0x30] sm:$0xf]
        %v765 = vld [vmem:[%s268 + $0x34] sm:$0xf]
        %v766 = vld [vmem:[%s268 + $0x38] sm:$0xf]
        %v767 = vld [vmem:[%s268 + $0x3c] sm:$0xf]
        %v770 = vunpack.c.l.b16 %v750
        %v771 = vunpack.c.l.b16 %v751
        %v772 = vpack.c.b16 %v771, %v770
        %v790 = vunpack.c.l.b16 %v752
        %v791 = vunpack.c.l.b16 %v753
        %v792 = vunpack.c.l.b16 %v754
        %v793 = vunpack.c.l.b16 %v755
        %v794 = vunpack.c.l.b16 %v756
        %v795 = vunpack.c.l.b16 %v757
        %v796 = vunpack.c.l.b16 %v758
        %v797 = vunpack.c.l.b16 %v759
        %v798 = vunpack.c.l.b16 %v760
        %v799 = vunpack.c.l.b16 %v761
        %v800 = vunpack.c.l.b16 %v762
        %v801 = vunpack.c.l.b16 %v763
        %v802 = vunpack.c.l.b16 %v764
        %v803 = vunpack.c.l.b16 %v765
        %v804 = vunpack.c.l.b16 %v766
        %v805 = vunpack.c.l.b16 %v767
        %v806 = vpack.c.b16 %v791, %v790
        %v807 = vpack.c.b16 %v793, %v792
        %v808 = vpack.c.b16 %v795, %v794
        %v809 = vpack.c.b16 %v797, %v796
        %v810 = vpack.c.b16 %v799, %v798
        %v811 = vpack.c.b16 %v801, %v800
        %v812 = vpack.c.b16 %v803, %v802
        %v813 = vpack.c.b16 %v805, %v804
        %822 = vmatprep.subr.bf16.mxu0 0
        %823 = vmatpush1.bf16.msra.mxu0 %v806
        %824 = vmatprep.subr.bf16.mxu0 0
        %825 = vmatpush1.bf16.msra.mxu0 %v807
        %826 = vmatprep.subr.bf16.mxu0 0
        %827 = vmatpush1.bf16.msra.mxu0 %v808
        %828 = vmatprep.subr.bf16.mxu0 0
        %829 = vmatpush1.bf16.msra.mxu0 %v809
        %830 = vmatprep.subr.bf16.mxu0 0
        %831 = vmatpush1.bf16.msra.mxu0 %v810
        %832 = vmatprep.subr.bf16.mxu0 0
        %833 = vmatpush1.bf16.msra.mxu0 %v811
        %834 = vmatprep.subr.bf16.mxu0 0
        %835 = vmatpush1.bf16.msra.mxu0 %v812
        %836 = vmatprep.subr.bf16.mxu0 0
        %837 = vmatpush1.bf16.msra.mxu0 %v813
        %838 = vmatprep.subr.bf16.mxu0 0
        %839 = vmatpush1.bf16.msra.mxu0 0
        %840 = vmatprep.subr.bf16.mxu0 0
        %841 = vmatpush1.bf16.msra.mxu0 0
        %842 = vmatprep.subr.bf16.mxu0 0
        %843 = vmatpush1.bf16.msra.mxu0 0
        %844 = vmatprep.subr.bf16.mxu0 0
        %845 = vmatpush1.bf16.msra.mxu0 0
        %846 = vmatprep.subr.bf16.mxu0 0
        %847 = vmatpush1.bf16.msra.mxu0 0
        %848 = vmatprep.subr.bf16.mxu0 0
        %849 = vmatpush1.bf16.msra.mxu0 0
        %850 = vmatprep.subr.bf16.mxu0 0
        %851 = vmatpush1.bf16.msra.mxu0 0
        %852 = vmatprep.subr.bf16.mxu0 0
        %853 = vmatpush1.bf16.msra.mxu0 0
        %854 = vmatprep.mubr.bf16.mxu0 0
        %855 = vmatmul.mubr.bf16.gmra.mrb[0].mxu0 %v772
        %v856 = vpop.f32.mrb[0].mxu0
        %v857 = vadd.f32 0.0, %v856
        %v858 = vpop.f32.mrb[0].mxu0
        %v859 = vpop.f32.mrb[0].mxu0
        %v860 = vadd.f32 0.0, %v859
        %v861 = vpop.f32.mrb[0].mxu0
        %862 = vdwg.mxu0
        %v863 = vpack.c.bf16 %v857, %v857
        %v864 = vpack.c.bf16 %v860, %v860
        %865 = vst [vmem:[%s297] sm:$0xf] %v863
        %866 = vst [vmem:[%s297 + $0x4] sm:$0xf] %v864
        %s867 = sand.u32 %s141, 1
        %s868 = scalar_lea.sflag [#allocation5], %s867
        %s869 = sand.u32 %s141, 1
        %s870 = smul.addr %s869, 8
        %s871 = scalar_lea.vmem [#allocation11], %s870
        // Predicated region
        $region57: #{tpu_custom_call.1} parent=35 // pred_check
          %p872 = pneg %p151
        $region58: #{tpu_custom_call.1} parent=35 // pred_check_branch
          %874 = sbr.rel (%p872) target = $region60
        $region59: #{tpu_custom_call.1} parent=35 // pred_region
          %s875 = smul.u32 2, %s29
          %s877 = ssub.s32 128, 128
          %878 = vsyncadd %s868, %s877
          %s879 = smul.addr %s875, 2
          %s880 = sadd.s32 %s30, %s879
          %s881 = smul.addr %s880, 64
          %s882 = scalar_lea.hbm %s4, %s881
          %s883 = sshll.u32 %s871, 4
          %s884 = int_to_ptr.vmem [resolvable:$true] %s883
          %889 = dma.vmem_to_hbm [thread:$0]  %s884, 128, %s882, %s868, 64, 128, 4
        $region60: #{tpu_custom_call.1} parent=35 // pred_fallthru
          _
      $region36: #{tpu_custom_call.1} parent=5 // pred_fallthru
        _
      %p890 = scmp.le.s32.totalorder 2, %s20
      // Predicated region
      $region61: #{tpu_custom_call.1} parent=5 // pred_check
        %p891 = pneg %p890
      $region62: #{tpu_custom_call.1} parent=5 // pred_check_branch
        %893 = sbr.rel (%p891) target = $region64
      $region63: #{tpu_custom_call.1} parent=5 // pred_region
        %s894 = ssub.s32 %s20, 2
        // Predicated region
        $region65: #{tpu_custom_call.1} parent=63 // pred_check
          %p895 = pneg %p157
        $region66: #{tpu_custom_call.1} parent=63 // pred_check_branch
          %897 = sbr.rel (%p895) target = $region68
        $region67: #{tpu_custom_call.1} parent=63 // pred_region
          %s898 = sand.u32 %s142, 1
          %s899 = scalar_lea.sflag [#allocation5], %s898
          %s900 = sand.u32 %s142, 1
          %s901 = smul.addr %s900, 8
          %s902 = scalar_lea.vmem [#allocation11], %s901
          %903 = dma.done %s899, 128
        $region68: #{tpu_custom_call.1} parent=63 // pred_fallthru
          _
      $region64: #{tpu_custom_call.1} parent=5 // pred_fallthru
        _
    $region6: #{tpu_custom_call.1} parent=1 // loop_footer
      %s24 = sadd.s32 1, %s20
    $region7: #{tpu_custom_call.1} parent=1 // loop_footer_branch
      %19 = sbr.rel target = $region3
    $region8: #{tpu_custom_call.1} parent=1 // loop_exit
      _
    %904 = vsyncpa [#allocation4], 1
    %s905 = scalar_lea.sflag [#allocation4], 1
    %906 = vsyncpa %s905, 1
    %907 = vsyncpa [#allocation7], 1
    %908 = vsyncpa [#allocation10], 1
    %s909 = scalar_lea.sflag [#allocation10], 1
    %910 = vsyncpa %s909, 1
    %911 = vsyncpa [#allocation5], 1
    %s912 = scalar_lea.sflag [#allocation5], 1
    %913 = vsyncpa %s912, 1

// kernel: tpu_custom_call.1
$region0: #{tpu_custom_call.1}
  #allocation0 [shape = 'u32[]', space=smem, size = 0x4, offset = 0x4, fixed_abs, tag = 'smem constant byte address 0x4 - core index']
  #allocation1 [shape = 'u32[144,128]{1,0:T(1,128)}', space=vmem, size = 0x12000, scoped, tag = 'internal scratch']
  #allocation2 [shape = 'bf16[2,8,128]{2,1,0:T(8,128)(2,1)}', space=vmem, size = 0x1000, scoped, tag = 'scratch operand']
  %s0 = inlined_call_operand.hbm [shape: bf16[4,8,128], index: 0, kind: input, shape index: {}]
  %s1 = inlined_call_operand.hbm [shape: bf16[128,128], index: 1, kind: input, shape index: {}]
  %s2 = inlined_call_operand.hbm [shape: bf16[128,128], index: 2, kind: input, shape index: {}]
  %s3 = inlined_call_operand.hbm [shape: bf16[128,256], index: 3, kind: input, shape index: {}]
  %s4 = inlined_call_operand.hbm [shape: bf16[4,8,256], index: 4, kind: output, shape index: {}]
  %s5 = sld [smem:[#allocation0]]
  $region69: #{tpu_custom_call.1} parent=0
    _
  %s7 = ssub.s32 1, %s5
  %s8 = scalar_select 0, %s7, %s5
  $region1: #{tpu_custom_call.1} parent=0
    #allocation3 [shape = 'u8[8192]{0}', space=vmem, size = 0x2000, scoped, tag = 'input window, operand 0']
    #allocation4 [shape = 's32[2]{0}', space=sflag, size = 0x8, scoped, tag = 'scoped memory for tpu_custom_call.1']
    #allocation5 [shape = 's32[2]{0}', space=sflag, size = 0x8, scoped, tag = 'scoped memory for tpu_custom_call.1']
    #allocation6 [shape = 'u8[32768]{0}', space=vmem, size = 0x8000, scoped, tag = 'input window, operand 1, single buffered']
    #allocation7 [shape = 's32[1]{0}', space=sflag, size = 0x4, scoped, tag = 'scoped memory for tpu_custom_call.1']
    #allocation8 [shape = 'u8[32768]{0}', space=vmem, size = 0x8000, scoped, tag = 'input window, operand 2, single buffered']
    #allocation9 [shape = 'u8[65536]{0}', space=vmem, size = 0x10000, scoped, tag = 'input window, operand 3']
    #allocation10 [shape = 's32[2]{0}', space=sflag, size = 0x8, scoped, tag = 'scoped memory for tpu_custom_call.1']
    #allocation11 [shape = 'u8[8192]{0}', space=vmem, size = 0x2000, scoped, tag = 'output window, operand 0']
    %9 = vsyncpa [#allocation4], 0
    %s10 = scalar_lea.sflag [#allocation4], 1
    %11 = vsyncpa %s10, 0
    %12 = vsyncpa [#allocation7], 0
    %13 = vsyncpa [#allocation10], 0
    %s14 = scalar_lea.sflag [#allocation10], 1
    %15 = vsyncpa %s14, 0
    %16 = vsyncpa [#allocation5], 0
    %s17 = scalar_lea.sflag [#allocation5], 1
    %18 = vsyncpa %s17, 0
    loop: start=0, step=1, limit=6
    $region2: #{tpu_custom_call.1} parent=1 // loop_pre_header
      _
    $region3: #{tpu_custom_call.1} parent=1 // loop_header
      %s20 = sphi 0, %s24
      %p21 = scmp.ge.s32.totalorder %s20, 6
      %s27 = sphi 0, %s39
      %s28 = sphi 0, %s35
      %s29 = sphi 0, %s27
      %s30 = sphi 0, %s28
      %s31 = sphi 0, %s29
      %s32 = sphi 0, %s30
      %s42 = sphi 0, %s44
      %s45 = sphi 0, %s42
      %s46 = sphi 0, %s45
      %s62 = sphi 0, %s46
      %s66 = sphi 0, %s66
      %s68 = sphi 0, %s66
      %s69 = sphi 0, %s68
      %s83 = sphi 0, %s69
      %s87 = sphi 0, %s87
      %s89 = sphi 0, %s87
      %s90 = sphi 0, %s89
      %s104 = sphi 0, %s90
      %s110 = sphi 0, %s112
      %s113 = sphi 0, %s110
      %s114 = sphi 0, %s113
      %s130 = sphi 0, %s114
      %s138 = sphi 0, %s140
      %s141 = sphi 0, %s138
      %s142 = sphi 0, %s141
      %s158 = sphi 0, %s142
    $region4: #{tpu_custom_call.1} parent=1 // loop_header_branch
      %23 = sbr.rel (%p21) target = $region8
    $region5: #{tpu_custom_call.1} parent=1 // loop_body
      %s25 = ssub.s32 %s20, 1
      %s26 = ssub.s32 %s20, 2
      %s33 = sadd.s32 1, %s28
      %p34 = scmp.ge.s32.totalorder %s33, 2
      %s35 = scalar_select %p34, 0, %s33
      %s36 = sadd.s32 1, %s27
      %s37 = scalar_select %p34, %s36, %s27
      %p38 = scmp.ge.s32.totalorder %s37, 2
      %s39 = scalar_select %p38, 0, %s37
      %s40 = ssub.s32 %s27, %s39
      %p41 = scmp.eq.s32.totalorder %s40, 0
      %s43 = sadd.s32 %s42, 1
      %s44 = scalar_select %p41, %s42, %s43
      %p47 = pneg %p41
      %p48 = scmp.eq.s32.totalorder %s20, 3
      %p49 = por %p47, %p48
      %p50 = scmp.ne.s32.totalorder %s42, %s45
      %p51 = scmp.eq.s32.totalorder %s20, 0
      %p52 = por %p50, %p51
      %p53 = scmp.ne.s32.totalorder %s42, %s45
      %p54 = scmp.eq.s32.totalorder %s25, 3
      %p55 = por %p53, %p54
      %p56 = scmp.ne.s32.totalorder %s45, %s46
      %p57 = scmp.eq.s32.totalorder %s25, 0
      %p58 = por %p56, %p57
      %p59 = scmp.ne.s32.totalorder %s45, %s46
      %p60 = scmp.eq.s32.totalorder %s26, 3
      %p61 = por %p59, %p60
      %p63 = scmp.ne.s32.totalorder %s46, %s62
      %p64 = scmp.eq.s32.totalorder %s26, 0
      %p65 = por %p63, %p64
      %s67 = sadd.s32 %s66, 1
      %p70 = scmp.eq.s32.totalorder %s20, 3
      %p71 = scmp.ne.s32.totalorder %s66, %s68
      %p72 = scmp.eq.s32.totalorder %s20, 0
      %p73 = por %p71, %p72
      %p74 = scmp.ne.s32.totalorder %s66, %s68
      %p75 = scmp.eq.s32.totalorder %s25, 3
      %p76 = por %p74, %p75
      %p77 = scmp.ne.s32.totalorder %s68, %s69
      %p78 = scmp.eq.s32.totalorder %s25, 0
      %p79 = por %p77, %p78
      %p80 = scmp.ne.s32.totalorder %s68, %s69
      %p81 = scmp.eq.s32.totalorder %s26, 3
      %p82 = por %p80, %p81
      %p84 = scmp.ne.s32.totalorder %s69, %s83
      %p85 = scmp.eq.s32.totalorder %s26, 0
      %p86 = por %p84, %p85
      %s88 = sadd.s32 %s87, 1
      %p91 = scmp.eq.s32.totalorder %s20, 3
      %p92 = scmp.ne.s32.totalorder %s87, %s89
      %p93 = scmp.eq.s32.totalorder %s20, 0
      %p94 = por %p92, %p93
      %p95 = scmp.ne.s32.totalorder %s87, %s89
      %p96 = scmp.eq.s32.totalorder %s25, 3
      %p97 = por %p95, %p96
      %p98 = scmp.ne.s32.totalorder %s89, %s90
      %p99 = scmp.eq.s32.totalorder %s25, 0
      %p100 = por %p98, %p99
      %p101 = scmp.ne.s32.totalorder %s89, %s90
      %p102 = scmp.eq.s32.totalorder %s26, 3
      %p103 = por %p101, %p102
      %p105 = scmp.ne.s32.totalorder %s90, %s104
      %p106 = scmp.eq.s32.totalorder %s26, 0
      %p107 = por %p105, %p106
      %s108 = ssub.s32 %s28, %s35
      %p109 = scmp.eq.s32.totalorder %s108, 0
      %s111 = sadd.s32 %s110, 1
      %s112 = scalar_select %p109, %s110, %s111
      %p115 = pneg %p109
      %p116 = scmp.eq.s32.totalorder %s20, 3
      %p117 = por %p115, %p116
      %p118 = scmp.ne.s32.totalorder %s110, %s113
      %p119 = scmp.eq.s32.totalorder %s20, 0
      %p120 = por %p118, %p119
      %p121 = scmp.ne.s32.totalorder %s110, %s113
      %p122 = scmp.eq.s32.totalorder %s25, 3
      %p123 = por %p121, %p122
      %p124 = scmp.ne.s32.totalorder %s113, %s114
      %p125 = scmp.eq.s32.totalorder %s25, 0
      %p126 = por %p124, %p125
      %p127 = scmp.ne.s32.totalorder %s113, %s114
      %p128 = scmp.eq.s32.totalorder %s26, 3
      %p129 = por %p127, %p128
      %p131 = scmp.ne.s32.totalorder %s114, %s130
      %p132 = scmp.eq.s32.totalorder %s26, 0
      %p133 = por %p131, %p132
      %s134 = ssub.s32 %s27, %s39
      %s135 = ssub.s32 %s28, %s35
      %s136 = sor.u32 %s134, %s135
      %p137 = scmp.eq.s32.totalorder %s136, 0
      %s139 = sadd.s32 %s138, 1
      %s140 = scalar_select %p137, %s138, %s139
      %p143 = pneg %p137
      %p144 = scmp.eq.s32.totalorder %s20, 3
      %p145 = por %p143, %p144
      %p146 = scmp.ne.s32.totalorder %s138, %s141
      %p147 = scmp.eq.s32.totalorder %s20, 0
      %p148 = por %p146, %p147
      %p149 = scmp.ne.s32.totalorder %s138, %s141
      %p150 = scmp.eq.s32.totalorder %s25, 3
      %p151 = por %p149, %p150
      %p152 = scmp.ne.s32.totalorder %s141, %s142
      %p153 = scmp.eq.s32.totalorder %s25, 0
      %p154 = por %p152, %p153
      %p155 = scmp.ne.s32.totalorder %s141, %s142
      %p156 = scmp.eq.s32.totalorder %s26, 3
      %p157 = por %p155, %p156
      %p159 = scmp.ne.s32.totalorder %s142, %s158
      %p160 = scmp.eq.s32.totalorder %s26, 0
      %p161 = por %p159, %p160
      %p162 = scmp.le.s32.totalorder 1, %s20
      %p163 = scmp.lt.s32.totalorder %s20, 5
      %p164 = pnand %p162, %p163
      %p165 = pneg %p164
      // Predicated region
      $region9: #{tpu_custom_call.1} parent=5 // pred_check
        _
      $region10: #{tpu_custom_call.1} parent=5 // pred_check_branch
        %167 = sbr.rel (%p164) target = $region12
      $region11: #{tpu_custom_call.1} parent=5 // pred_region
        %s168 = ssub.s32 %s20, 1
        // Predicated region
        $region13: #{tpu_custom_call.1} parent=11 // pred_check
          %p169 = pneg %p79
        $region14: #{tpu_custom_call.1} parent=11 // pred_check_branch
          %171 = sbr.rel (%p169) target = $region16
        $region15: #{tpu_custom_call.1} parent=11 // pred_region
          %s173 = ssub.s32 1024, 1024
          %174 = vsyncadd [#allocation7], %s173
          %s175 = sshll.u32 [#allocation6], 4
          %s176 = int_to_ptr.vmem [resolvable:$true] %s175
          %181 = dma.hbm_to_vmem [thread:$0]  %s1, 1024, %s176, [#allocation7], 64, 64, 4
        $region16: #{tpu_custom_call.1} parent=11 // pred_fallthru
          _
        // Predicated region
        $region17: #{tpu_custom_call.1} parent=11 // pred_check
          %p182 = pneg %p100
        $region18: #{tpu_custom_call.1} parent=11 // pred_check_branch
          %184 = sbr.rel (%p182) target = $region20
        $region19: #{tpu_custom_call.1} parent=11 // pred_region
          %s186 = ssub.s32 1024, 1024
          %187 = vsyncadd [#allocation7], %s186
          %s188 = sshll.u32 [#allocation8], 4
          %s189 = int_to_ptr.vmem [resolvable:$true] %s188
          %194 = dma.hbm_to_vmem [thread:$0]  %s2, 1024, %s189, [#allocation7], 64, 64, 4
        $region20: #{tpu_custom_call.1} parent=11 // pred_fallthru
          _
      $region12: #{tpu_custom_call.1} parent=5 // pred_fallthru
        _
      %p195 = scmp.lt.s32.totalorder %s20, 4
      // Predicated region
      $region21: #{tpu_custom_call.1} parent=5 // pred_check
        %p196 = pneg %p195
      $region22: #{tpu_custom_call.1} parent=5 // pred_check_branch
        %198 = sbr.rel (%p196) target = $region24
      $region23: #{tpu_custom_call.1} parent=5 // pred_region
        // Predicated region
        $region25: #{tpu_custom_call.1} parent=23 // pred_check
          %p199 = pneg %p52
        $region26: #{tpu_custom_call.1} parent=23 // pred_check_branch
          %201 = sbr.rel (%p199) target = $region28
        $region27: #{tpu_custom_call.1} parent=23 // pred_region
          %s202 = sand.u32 %s42, 1
          %s203 = scalar_lea.sflag [#allocation4], %s202
          %s204 = sand.u32 %s42, 1
          %s205 = smul.addr %s204, 8
          %s206 = scalar_lea.vmem [#allocation3], %s205
          %s207 = smul.u32 2, %s27
          %s209 = ssub.s32 128, 128
          %210 = vsyncadd %s203, %s209
          %s211 = smul.addr %s207, 64
          %s212 = scalar_lea.hbm %s0, %s211
          %s213 = sshll.u32 %s206, 4
          %s214 = int_to_ptr.vmem [resolvable:$true] %s213
          %219 = dma.hbm_to_vmem [thread:$0]  %s212, 128, %s214, %s203, 64, 64, 4
        $region28: #{tpu_custom_call.1} parent=23 // pred_fallthru
          _
        // Predicated region
        $region29: #{tpu_custom_call.1} parent=23 // pred_check
          %p220 = pneg %p120
        $region30: #{tpu_custom_call.1} parent=23 // pred_check_branch
          %222 = sbr.rel (%p220) target = $region32
        $region31: #{tpu_custom_call.1} parent=23 // pred_region
          %s223 = sand.u32 %s110, 1
          %s224 = scalar_lea.sflag [#allocation10], %s223
          %s225 = sand.u32 %s110, 1
          %s226 = smul.addr %s225, 64
          %s227 = scalar_lea.vmem [#allocation9], %s226
          %s229 = ssub.s32 1024, 1024
          %230 = vsyncadd %s224, %s229
          %s231 = smul.addr %s28, 64
          %s232 = scalar_lea.hbm %s3, %s231
          %s233 = sshll.u32 %s227, 4
          %s234 = int_to_ptr.vmem [resolvable:$true] %s233
          %239 = dma.hbm_to_vmem [thread:$0]  %s232, 1024, %s234, %s224, 128, 64, 4
        $region32: #{tpu_custom_call.1} parent=23 // pred_fallthru
          _
      $region24: #{tpu_custom_call.1} parent=5 // pred_fallthru
        _
      %p240 = scmp.le.s32.totalorder 1, %s20
      %p241 = scmp.lt.s32.totalorder %s20, 5
      %p242 = pnand %p240, %p241
      %p243 = pneg %p242
      // Predicated region
      $region33: #{tpu_custom_call.1} parent=5 // pred_check
        _
      $region34: #{tpu_custom_call.1} parent=5 // pred_check_branch
        %245 = sbr.rel (%p242) target = $region36
      $region35: #{tpu_custom_call.1} parent=5 // pred_region
        %s246 = ssub.s32 %s20, 1
        %s247 = sand.u32 %s45, 1
        %s248 = scalar_lea.sflag [#allocation4], %s247
        %s249 = sand.u32 %s45, 1
        %s250 = smul.addr %s249, 8
        %s251 = scalar_lea.vmem [#allocation3], %s250
        // Predicated region
        $region37: #{tpu_custom_call.1} parent=35 // pred_check
          %p252 = pneg %p58
        $region38: #{tpu_custom_call.1} parent=35 // pred_check_branch
          %254 = sbr.rel (%p252) target = $region40
        $region39: #{tpu_custom_call.1} parent=35 // pred_region
          %255 = dma.done %s248, 128
        $region40: #{tpu_custom_call.1} parent=35 // pred_fallthru
          _
        // Predicated region
        $region41: #{tpu_custom_call.1} parent=35 // pred_check
          %p256 = pneg %p79
        $region42: #{tpu_custom_call.1} parent=35 // pred_check_branch
          %258 = sbr.rel (%p256) target = $region44
        $region43: #{tpu_custom_call.1} parent=35 // pred_region
          %259 = dma.done [#allocation7], 1024
        $region44: #{tpu_custom_call.1} parent=35 // pred_fallthru
          _
        // Predicated region
        $region45: #{tpu_custom_call.1} parent=35 // pred_check
          %p260 = pneg %p100
        $region46: #{tpu_custom_call.1} parent=35 // pred_check_branch
          %262 = sbr.rel (%p260) target = $region48
        $region47: #{tpu_custom_call.1} parent=35 // pred_region
          %263 = dma.done [#allocation7], 1024
        $region48: #{tpu_custom_call.1} parent=35 // pred_fallthru
          _
        %s264 = sand.u32 %s113, 1
        %s265 = scalar_lea.sflag [#allocation10], %s264
        %s266 = sand.u32 %s113, 1
        %s267 = smul.addr %s266, 64
        %s268 = scalar_lea.vmem [#allocation9], %s267
        // Predicated region
        $region49: #{tpu_custom_call.1} parent=35 // pred_check
          %p269 = pneg %p126
        $region50: #{tpu_custom_call.1} parent=35 // pred_check_branch
          %271 = sbr.rel (%p269) target = $region52
        $region51: #{tpu_custom_call.1} parent=35 // pred_region
          %272 = dma.done %s265, 1024
        $region52: #{tpu_custom_call.1} parent=35 // pred_fallthru
          _
        %s273 = sand.u32 %s45, 1
        %s274 = scalar_lea.sflag [#allocation4], %s273
        %s275 = sand.u32 %s45, 1
        %s276 = smul.addr %s275, 8
        %s277 = scalar_lea.vmem [#allocation3], %s276
        %p278 = pneg %p58
        %p279 = pneg %p55
        %p280 = pneg %p79
        %p281 = pneg %p76
        %p282 = pneg %p100
        %p283 = pneg %p97
        %s284 = sand.u32 %s113, 1
        %s285 = scalar_lea.sflag [#allocation10], %s284
        %s286 = sand.u32 %s113, 1
        %s287 = smul.addr %s286, 64
        %s288 = scalar_lea.vmem [#allocation9], %s287
        %p289 = pneg %p126
        %p290 = pneg %p123
        %p291 = pneg %p154
        %p292 = pneg %p151
        %s293 = sand.u32 %s141, 1
        %s294 = scalar_lea.sflag [#allocation5], %s293
        %s295 = sand.u32 %s141, 1
        %s296 = smul.addr %s295, 8
        %s297 = scalar_lea.vmem [#allocation11], %s296
        %s298 = smul.u32 2, %s29
        %s299 = smul.u32 2, %s29
        %p301 = scmp.eq.s32.totalorder %s30, 0
        // Predicated region
        $region53: #{tpu_custom_call.1} parent=35 // pred_check
          %p302 = pneg %p301
        $region54: #{tpu_custom_call.1} parent=35 // pred_check_branch
          %304 = sbr.rel (%p302) target = $region56
        $region55: #{tpu_custom_call.1} parent=35 // pred_region
          %v305 = vld [vmem:[%s251] sm:$0xf]
          %v306 = vld [vmem:[%s251 + $0x4] sm:$0xf]
          %v307 = vld [vmem:[#allocation6] sm:$0xf]
          %v308 = vld [vmem:[#allocation6 + $0x4] sm:$0xf]
          %v309 = vld [vmem:[#allocation6 + $0x8] sm:$0xf]
          %v310 = vld [vmem:[#allocation6 + $0xc] sm:$0xf]
          %v311 = vld [vmem:[#allocation6 + $0x10] sm:$0xf]
          %v312 = vld [vmem:[#allocation6 + $0x14] sm:$0xf]
          %v313 = vld [vmem:[#allocation6 + $0x18] sm:$0xf]
          %v314 = vld [vmem:[#allocation6 + $0x1c] sm:$0xf]
          %v315 = vld [vmem:[#allocation6 + $0x20] sm:$0xf]
          %v316 = vld [vmem:[#allocation6 + $0x24] sm:$0xf]
          %v317 = vld [vmem:[#allocation6 + $0x28] sm:$0xf]
          %v318 = vld [vmem:[#allocation6 + $0x2c] sm:$0xf]
          %v319 = vld [vmem:[#allocation6 + $0x30] sm:$0xf]
          %v320 = vld [vmem:[#allocation6 + $0x34] sm:$0xf]
          %v321 = vld [vmem:[#allocation6 + $0x38] sm:$0xf]
          %v322 = vld [vmem:[#allocation6 + $0x3c] sm:$0xf]
          %v325 = vunpack.c.l.b16 %v305
          %v326 = vunpack.c.l.b16 %v306
          %v327 = vpack.c.b16 %v326, %v325
          %v345 = vunpack.c.l.b16 %v307
          %v346 = vunpack.c.l.b16 %v308
          %v347 = vunpack.c.l.b16 %v309
          %v348 = vunpack.c.l.b16 %v310
          %v349 = vunpack.c.l.b16 %v311
          %v350 = vunpack.c.l.b16 %v312
          %v351 = vunpack.c.l.b16 %v313
          %v352 = vunpack.c.l.b16 %v314
          %v353 = vunpack.c.l.b16 %v315
          %v354 = vunpack.c.l.b16 %v316
          %v355 = vunpack.c.l.b16 %v317
          %v356 = vunpack.c.l.b16 %v318
          %v357 = vunpack.c.l.b16 %v319
          %v358 = vunpack.c.l.b16 %v320
          %v359 = vunpack.c.l.b16 %v321
          %v360 = vunpack.c.l.b16 %v322
          %v361 = vpack.c.b16 %v346, %v345
          %v362 = vpack.c.b16 %v348, %v347
          %v363 = vpack.c.b16 %v350, %v349
          %v364 = vpack.c.b16 %v352, %v351
          %v365 = vpack.c.b16 %v354, %v353
          %v366 = vpack.c.b16 %v356, %v355
          %v367 = vpack.c.b16 %v358, %v357
          %v368 = vpack.c.b16 %v360, %v359
          %377 = vmatprep.subr.bf16.mxu0 0
          %378 = vmatpush1.bf16.msra.mxu0 %v361
          %379 = vmatprep.subr.bf16.mxu0 0
          %380 = vmatpush1.bf16.msra.mxu0 %v362
          %381 = vmatprep.subr.bf16.mxu0 0
          %382 = vmatpush1.bf16.msra.mxu0 %v363
          %383 = vmatprep.subr.bf16.mxu0 0
          %384 = vmatpush1.bf16.msra.mxu0 %v364
          %385 = vmatprep.subr.bf16.mxu0 0
          %386 = vmatpush1.bf16.msra.mxu0 %v365
          %387 = vmatprep.subr.bf16.mxu0 0
          %388 = vmatpush1.bf16.msra.mxu0 %v366
          %389 = vmatprep.subr.bf16.mxu0 0
          %390 = vmatpush1.bf16.msra.mxu0 %v367
          %391 = vmatprep.subr.bf16.mxu0 0
          %392 = vmatpush1.bf16.msra.mxu0 %v368
          %393 = vmatprep.subr.bf16.mxu0 0
          %394 = vmatpush1.bf16.msra.mxu0 0
          %395 = vmatprep.subr.bf16.mxu0 0
          %396 = vmatpush1.bf16.msra.mxu0 0
          %397 = vmatprep.subr.bf16.mxu0 0
          %398 = vmatpush1.bf16.msra.mxu0 0
          %399 = vmatprep.subr.bf16.mxu0 0
          %400 = vmatpush1.bf16.msra.mxu0 0
          %401 = vmatprep.subr.bf16.mxu0 0
          %402 = vmatpush1.bf16.msra.mxu0 0
          %403 = vmatprep.subr.bf16.mxu0 0
          %404 = vmatpush1.bf16.msra.mxu0 0
          %405 = vmatprep.subr.bf16.mxu0 0
          %406 = vmatpush1.bf16.msra.mxu0 0
          %407 = vmatprep.subr.bf16.mxu0 0
          %408 = vmatpush1.bf16.msra.mxu0 0
          %409 = vmatprep.mubr.bf16.mxu0 0
          %410 = vmatmul.mubr.bf16.gmra.mrb[0].mxu0 %v327
          %v411 = vpop.f32.mrb[0].mxu0
          %v412 = vadd.f32 0.0, %v411
          %v413 = vpop.f32.mrb[0].mxu0
          %v414 = vpop.f32.mrb[0].mxu0
          %v415 = vadd.f32 0.0, %v414
          %v416 = vpop.f32.mrb[0].mxu0
          %417 = vdwg.mxu0
          %v418 = vld [vmem:[#allocation8] sm:$0xf]
          %v419 = vld [vmem:[#allocation8 + $0x4] sm:$0xf]
          %v420 = vld [vmem:[#allocation8 + $0x8] sm:$0xf]
          %v421 = vld [vmem:[#allocation8 + $0xc] sm:$0xf]
          %v422 = vld [vmem:[#allocation8 + $0x10] sm:$0xf]
          %v423 = vld [vmem:[#allocation8 + $0x14] sm:$0xf]
          %v424 = vld [vmem:[#allocation8 + $0x18] sm:$0xf]
          %v425 = vld [vmem:[#allocation8 + $0x1c] sm:$0xf]
          %v426 = vld [vmem:[#allocation8 + $0x20] sm:$0xf]
          %v427 = vld [vmem:[#allocation8 + $0x24] sm:$0xf]
          %v428 = vld [vmem:[#allocation8 + $0x28] sm:$0xf]
          %v429 = vld [vmem:[#allocation8 + $0x2c] sm:$0xf]
          %v430 = vld [vmem:[#allocation8 + $0x30] sm:$0xf]
          %v431 = vld [vmem:[#allocation8 + $0x34] sm:$0xf]
          %v432 = vld [vmem:[#allocation8 + $0x38] sm:$0xf]
          %v433 = vld [vmem:[#allocation8 + $0x3c] sm:$0xf]
          %v450 = vunpack.c.l.b16 %v418
          %v451 = vunpack.c.l.b16 %v419
          %v452 = vunpack.c.l.b16 %v420
          %v453 = vunpack.c.l.b16 %v421
          %v454 = vunpack.c.l.b16 %v422
          %v455 = vunpack.c.l.b16 %v423
          %v456 = vunpack.c.l.b16 %v424
          %v457 = vunpack.c.l.b16 %v425
          %v458 = vunpack.c.l.b16 %v426
          %v459 = vunpack.c.l.b16 %v427
          %v460 = vunpack.c.l.b16 %v428
          %v461 = vunpack.c.l.b16 %v429
          %v462 = vunpack.c.l.b16 %v430
          %v463 = vunpack.c.l.b16 %v431
          %v464 = vunpack.c.l.b16 %v432
          %v465 = vunpack.c.l.b16 %v433
          %v466 = vpack.c.b16 %v451, %v450
          %v467 = vpack.c.b16 %v453, %v452
          %v468 = vpack.c.b16 %v455, %v454
          %v469 = vpack.c.b16 %v457, %v456
          %v470 = vpack.c.b16 %v459, %v458
          %v471 = vpack.c.b16 %v461, %v460
          %v472 = vpack.c.b16 %v463, %v462
          %v473 = vpack.c.b16 %v465, %v464
          %482 = vmatprep.subr.bf16.mxu0 0
          %483 = vmatpush1.bf16.msra.mxu0 %v466
          %484 = vmatprep.subr.bf16.mxu0 0
          %485 = vmatpush1.bf16.msra.mxu0 %v467
          %486 = vmatprep.subr.bf16.mxu0 0
          %487 = vmatpush1.bf16.msra.mxu0 %v468
          %488 = vmatprep.subr.bf16.mxu0 0
          %489 = vmatpush1.bf16.msra.mxu0 %v469
          %490 = vmatprep.subr.bf16.mxu0 0
          %491 = vmatpush1.bf16.msra.mxu0 %v470
          %492 = vmatprep.subr.bf16.mxu0 0
          %493 = vmatpush1.bf16.msra.mxu0 %v471
          %494 = vmatprep.subr.bf16.mxu0 0
          %495 = vmatpush1.bf16.msra.mxu0 %v472
          %496 = vmatprep.subr.bf16.mxu0 0
          %497 = vmatpush1.bf16.msra.mxu0 %v473
          %498 = vmatprep.subr.bf16.mxu0 0
          %499 = vmatpush1.bf16.msra.mxu0 0
          %500 = vmatprep.subr.bf16.mxu0 0
          %501 = vmatpush1.bf16.msra.mxu0 0
          %502 = vmatprep.subr.bf16.mxu0 0
          %503 = vmatpush1.bf16.msra.mxu0 0
          %504 = vmatprep.subr.bf16.mxu0 0
          %505 = vmatpush1.bf16.msra.mxu0 0
          %506 = vmatprep.subr.bf16.mxu0 0
          %507 = vmatpush1.bf16.msra.mxu0 0
          %508 = vmatprep.subr.bf16.mxu0 0
          %509 = vmatpush1.bf16.msra.mxu0 0
          %510 = vmatprep.subr.bf16.mxu0 0
          %511 = vmatpush1.bf16.msra.mxu0 0
          %512 = vmatprep.subr.bf16.mxu0 0
          %513 = vmatpush1.bf16.msra.mxu0 0
          %514 = vmatprep.mubr.bf16.mxu0 0
          %515 = vmatmul.mubr.bf16.gmra.mrb[0].mxu0 %v327
          %v516 = vpop.f32.mrb[0].mxu0
          %v517 = vadd.f32 0.0, %v516
          %v518 = vpop.f32.mrb[0].mxu0
          %v519 = vpop.f32.mrb[0].mxu0
          %v520 = vadd.f32 0.0, %v519
          %v521 = vpop.f32.mrb[0].mxu0
          %522 = vdwg.mxu0
          %v523 = vpack.c.bf16 %v415, %v412
          %v525 = vunpack.c.l.b16 %v523
          %v526 = vunpack.c.h.b16 %v523
          %v527 = vpack.c.b16 %v525, %v525
          %v528 = vpack.c.b16 %v526, %v526
          %v531 = vpack.c.bf16 %v520, %v517
          %v533 = vunpack.c.l.b16 %v531
          %v534 = vunpack.c.h.b16 %v531
          %v535 = vpack.c.b16 %v533, %v533
          %v536 = vpack.c.b16 %v534, %v534
          %539 = vmatprep.subr.bf16.mxu0 0
          %540 = vmatpush1.bf16.xpose.msra.mxu0 %v527
          %541 = vmatprep.subr.bf16.mxu0 0
          %542 = vmatpush1.bf16.xpose.msra.mxu0 0
          %543 = vmatprep.subr.bf16.mxu0 0
          %544 = vmatpush1.bf16.xpose.msra.mxu0 0
          %545 = vmatprep.subr.bf16.mxu0 0
          %546 = vmatpush1.bf16.xpose.msra.mxu0 0
          %547 = vmatprep.subr.bf16.mxu0 0
          %548 = vmatpush1.bf16.xpose.msra.mxu0 0
          %549 = vmatprep.subr.bf16.mxu0 0
          %550 = vmatpush1.bf16.xpose.msra.mxu0 0
          %551 = vmatprep.subr.bf16.mxu0 0
          %552 = vmatpush1.bf16.xpose.msra.mxu0 0
          %553 = vmatprep.subr.bf16.mxu0 0
          %554 = vmatpush1.bf16.xpose.msra.mxu0 0
          %555 = vmatprep.subr.bf16.mxu0 0
          %556 = vmatpush1.bf16.xpose.msra.mxu0 0
          %557 = vmatprep.subr.bf16.mxu0 0
          %558 = vmatpush1.bf16.xpose.msra.mxu0 0
          %559 = vmatprep.subr.bf16.mxu0 0
          %560 = vmatpush1.bf16.xpose.msra.mxu0 0
          %561 = vmatprep.subr.bf16.mxu0 0
          %562 = vmatpush1.bf16.xpose.msra.mxu0 0
          %563 = vmatprep.subr.bf16.mxu0 0
          %564 = vmatpush1.bf16.xpose.msra.mxu0 0
          %565 = vmatprep.subr.bf16.mxu0 0
          %566 = vmatpush1.bf16.xpose.msra.mxu0 0
          %567 = vmatprep.subr.bf16.mxu0 0
          %568 = vmatpush1.bf16.xpose.msra.mxu0 0
          %569 = vmatprep.subr.bf16.mxu0 0
          %570 = vmatpush1.bf16.xpose.msra.mxu0 0
          %571 = vmatprep.mubr.bf16.mxu0 0
          %572 = vmatmul.mubr.bf16.gmra.mrb[0].mxu0 %v535
          %v573 = vpop.f32.mrb[0].mxu0
          %v574 = vadd.f32 0.0, %v573
          %v575 = vpop.f32.mrb[0].mxu0
          %v576 = vpop.f32.mrb[0].mxu0
          %v577 = vpop.f32.mrb[0].mxu0
          %578 = vdwg.mxu0
          %579 = vmatprep.subr.bf16.mxu0 0
          %580 = vmatpush1.bf16.xpose.msra.mxu0 %v528
          %581 = vmatprep.subr.bf16.mxu0 0
          %582 = vmatpush1.bf16.xpose.msra.mxu0 0
          %583 = vmatprep.subr.bf16.mxu0 0
          %584 = vmatpush1.bf16.xpose.msra.mxu0 0
          %585 = vmatprep.subr.bf16.mxu0 0
          %586 = vmatpush1.bf16.xpose.msra.mxu0 0
          %587 = vmatprep.subr.bf16.mxu0 0
          %588 = vmatpush1.bf16.xpose.msra.mxu0 0
          %589 = vmatprep.subr.bf16.mxu0 0
          %590 = vmatpush1.bf16.xpose.msra.mxu0 0
          %591 = vmatprep.subr.bf16.mxu0 0
          %592 = vmatpush1.bf16.xpose.msra.mxu0 0
          %593 = vmatprep.subr.bf16.mxu0 0
          %594 = vmatpush1.bf16.xpose.msra.mxu0 0
          %595 = vmatprep.subr.bf16.mxu0 0
          %596 = vmatpush1.bf16.xpose.msra.mxu0 0
          %597 = vmatprep.subr.bf16.mxu0 0
          %598 = vmatpush1.bf16.xpose.msra.mxu0 0
          %599 = vmatprep.subr.bf16.mxu0 0
          %600 = vmatpush1.bf16.xpose.msra.mxu0 0
          %601 = vmatprep.subr.bf16.mxu0 0
          %602 = vmatpush1.bf16.xpose.msra.mxu0 0
          %603 = vmatprep.subr.bf16.mxu0 0
          %604 = vmatpush1.bf16.xpose.msra.mxu0 0
          %605 = vmatprep.subr.bf16.mxu0 0
          %606 = vmatpush1.bf16.xpose.msra.mxu0 0
          %607 = vmatprep.subr.bf16.mxu0 0
          %608 = vmatpush1.bf16.xpose.msra.mxu0 0
          %609 = vmatprep.subr.bf16.mxu0 0
          %610 = vmatpush1.bf16.xpose.msra.mxu0 0
          %611 = vmatprep.mubr.bf16.mxu0 0
          %612 = vmatmul.mubr.bf16.gmra.mrb[0].mxu0 %v536
          %v613 = vpop.f32.mrb[0].mxu0
          %v614 = vadd.f32 0.0, %v613
          %v615 = vpop.f32.mrb[0].mxu0
          %v616 = vpop.f32.mrb[0].mxu0
          %v617 = vpop.f32.mrb[0].mxu0
          %618 = vdwg.mxu0
          %v619 = vlaneseq
          %v620 = vshrl.u32 %v619, 7
          %v621 = vlaneseq
          %v622 = vand.u32 %v621, 127
          %vm623 = vcmp.le.s32.totalorder %v622, %v620
          %v624 = vsel %vm623, 1, 0
          %vm625 = vcmp.eq.s32.totalorder %v624, 1
          %v626 = vsel %vm625, %v574, -inf
          %v627 = vsel %vm625, %v614, -inf
          %vm628 = vcmask 64512
          %v629 = vsel %vm628, %v626, -inf
          %630 = vmax.xlane.f32.xlu0 %v629
          %v631 = vpop.xlane.xlu0 %630
          %v632 = vsel %vm628, %v627, -inf
          %633 = vmax.xlane.f32.xlu0 %v632
          %v634 = vpop.xlane.xlu0 %633
          %v635 = vsub.f32 %v626, %v631
          %v636 = vsub.f32 %v627, %v634
          %v637 = vmul.f32 %v635, 1.442695
          %v638 = vpow.pop %v637
          %v639 = vmul.f32 %v636, 1.442695
          %v640 = vpow.pop %v639
          %v641 = vsel %vm628, %v638, 0.0
          %642 = vadd.xlane.f32.xlu0 %v641
          %v643 = vpop.xlane.xlu0 %642
          %v644 = vsel %vm628, %v640, 0.0
          %645 = vadd.xlane.f32.xlu0 %v644
          %v646 = vpop.xlane.xlu0 %645
          %v647 = vrcp.pop %v643
          %v648 = vrcp.pop %v646
          %v649 = vmul.f32 %v638, %v647
          %v650 = vmul.f32 %v640, %v648
          %v651 = vpack.c.bf16 %v649, %v649
          %v652 = vpack.c.bf16 %v650, %v650
          %v654 = vsel %vm628, %v651, 0
          %vm656 = vcmask 1043456
          %v658 = vsel %vm656, %v535, 0
          %660 = vmatprep.subr.bf16.mxu0 0
          %661 = vmatpush1.bf16.msra.mxu0 %v658
          %662 = vmatprep.subr.bf16.mxu0 0
          %663 = vmatpush1.bf16.msra.mxu0 0
          %664 = vmatprep.subr.bf16.mxu0 0
          %665 = vmatpush1.bf16.msra.mxu0 0
          %666 = vmatprep.subr.bf16.mxu0 0
          %667 = vmatpush1.bf16.msra.mxu0 0
          %668 = vmatprep.subr.bf16.mxu0 0
          %669 = vmatpush1.bf16.msra.mxu0 0
          %670 = vmatprep.subr.bf16.mxu0 0
          %671 = vmatpush1.bf16.msra.mxu0 0
          %672 = vmatprep.subr.bf16.mxu0 0
          %673 = vmatpush1.bf16.msra.mxu0 0
          %674 = vmatprep.subr.bf16.mxu0 0
          %675 = vmatpush1.bf16.msra.mxu0 0
          %676 = vmatprep.subr.bf16.mxu0 0
          %677 = vmatpush1.bf16.msra.mxu0 0
          %678 = vmatprep.subr.bf16.mxu0 0
          %679 = vmatpush1.bf16.msra.mxu0 0
          %680 = vmatprep.subr.bf16.mxu0 0
          %681 = vmatpush1.bf16.msra.mxu0 0
          %682 = vmatprep.subr.bf16.mxu0 0
          %683 = vmatpush1.bf16.msra.mxu0 0
          %684 = vmatprep.subr.bf16.mxu0 0
          %685 = vmatpush1.bf16.msra.mxu0 0
          %686 = vmatprep.subr.bf16.mxu0 0
          %687 = vmatpush1.bf16.msra.mxu0 0
          %688 = vmatprep.subr.bf16.mxu0 0
          %689 = vmatpush1.bf16.msra.mxu0 0
          %690 = vmatprep.subr.bf16.mxu0 0
          %691 = vmatpush1.bf16.msra.mxu0 0
          %692 = vmatprep.mubr.bf16.mxu0 0
          %693 = vmatmul.mubr.bf16.gmra.mrb[0].mxu0 %v654
          %v694 = vpop.f32.mrb[0].mxu0
          %v695 = vadd.f32 0.0, %v694
          %v696 = vpop.f32.mrb[0].mxu0
          %v697 = vpop.f32.mrb[0].mxu0
          %v698 = vpop.f32.mrb[0].mxu0
          %699 = vdwg.mxu0
          %v701 = vsel %vm628, %v652, 0
          %v704 = vsel %vm656, %v536, 0
          %706 = vmatprep.subr.bf16.mxu0 0
          %707 = vmatpush1.bf16.msra.mxu0 %v704
          %708 = vmatprep.subr.bf16.mxu0 0
          %709 = vmatpush1.bf16.msra.mxu0 0
          %710 = vmatprep.subr.bf16.mxu0 0
          %711 = vmatpush1.bf16.msra.mxu0 0
          %712 = vmatprep.subr.bf16.mxu0 0
          %713 = vmatpush1.bf16.msra.mxu0 0
          %714 = vmatprep.subr.bf16.mxu0 0
          %715 = vmatpush1.bf16.msra.mxu0 0
          %716 = vmatprep.subr.bf16.mxu0 0
          %717 = vmatpush1.bf16.msra.mxu0 0
          %718 = vmatprep.subr.bf16.mxu0 0
          %719 = vmatpush1.bf16.msra.mxu0 0
          %720 = vmatprep.subr.bf16.mxu0 0
          %721 = vmatpush1.bf16.msra.mxu0 0
          %722 = vmatprep.subr.bf16.mxu0 0
          %723 = vmatpush1.bf16.msra.mxu0 0
          %724 = vmatprep.subr.bf16.mxu0 0
          %725 = vmatpush1.bf16.msra.mxu0 0
          %726 = vmatprep.subr.bf16.mxu0 0
          %727 = vmatpush1.bf16.msra.mxu0 0
          %728 = vmatprep.subr.bf16.mxu0 0
          %729 = vmatpush1.bf16.msra.mxu0 0
          %730 = vmatprep.subr.bf16.mxu0 0
          %731 = vmatpush1.bf16.msra.mxu0 0
          %732 = vmatprep.subr.bf16.mxu0 0
          %733 = vmatpush1.bf16.msra.mxu0 0
          %734 = vmatprep.subr.bf16.mxu0 0
          %735 = vmatpush1.bf16.msra.mxu0 0
          %736 = vmatprep.subr.bf16.mxu0 0
          %737 = vmatpush1.bf16.msra.mxu0 0
          %738 = vmatprep.mubr.bf16.mxu0 0
          %739 = vmatmul.mubr.bf16.gmra.mrb[0].mxu0 %v701
          %v740 = vpop.f32.mrb[0].mxu0
          %v741 = vadd.f32 0.0, %v740
          %v742 = vpop.f32.mrb[0].mxu0
          %v743 = vpop.f32.mrb[0].mxu0
          %v744 = vpop.f32.mrb[0].mxu0
          %745 = vdwg.mxu0
          %v746 = vpack.c.bf16 %v695, %v695
          %v747 = vpack.c.bf16 %v741, %v741
          %748 = vst [vmem:[#allocation2] sm:$0xf] %v746
          %749 = vst [vmem:[#allocation2 + $0x4] sm:$0xf] %v747
        $region56: #{tpu_custom_call.1} parent=35 // pred_fallthru
          _
        %v750 = vld [vmem:[#allocation2] sm:$0xf]
        %v751 = vld [vmem:[#allocation2 + $0x4] sm:$0xf]
        %v752 = vld [vmem:[%s268] sm:$0xf]
        %v753 = vld [vmem:[%s268 + $0x4] sm:$0xf]
        %v754 = vld [vmem:[%s268 + $0x8] sm:$0xf]
        %v755 = vld [vmem:[%s268 + $0xc] sm:$0xf]
        %v756 = vld [vmem:[%s268 + $0x10] sm:$0xf]
        %v757 = vld [vmem:[%s268 + $0x14] sm:$0xf]
        %v758 = vld [vmem:[%s268 + $0x18] sm:$0xf]
        %v759 = vld [vmem:[%s268 + $0x1c] sm:$0xf]
        %v760 = vld [vmem:[%s268 + $0x20] sm:$0xf]
        %v761 = vld [vmem:[%s268 + $0x24] sm:$0xf]
        %v762 = vld [vmem:[%s268 + $0x28] sm:$0xf]
        %v763 = vld [vmem:[%s268 + $0x2c] sm:$0xf]
        %v764 = vld [vmem:[%s268 + $0x30] sm:$0xf]
        %v765 = vld [vmem:[%s268 + $0x34] sm:$0xf]
        %v766 = vld [vmem:[%s268 + $0x38] sm:$0xf]
        %v767 = vld [vmem:[%s268 + $0x3c] sm:$0xf]
        %v770 = vunpack.c.l.b16 %v750
        %v771 = vunpack.c.l.b16 %v751
        %v772 = vpack.c.b16 %v771, %v770
        %v790 = vunpack.c.l.b16 %v752
        %v791 = vunpack.c.l.b16 %v753
        %v792 = vunpack.c.l.b16 %v754
        %v793 = vunpack.c.l.b16 %v755
        %v794 = vunpack.c.l.b16 %v756
        %v795 = vunpack.c.l.b16 %v757
        %v796 = vunpack.c.l.b16 %v758
        %v797 = vunpack.c.l.b16 %v759
        %v798 = vunpack.c.l.b16 %v760
        %v799 = vunpack.c.l.b16 %v761
        %v800 = vunpack.c.l.b16 %v762
        %v801 = vunpack.c.l.b16 %v763
        %v802 = vunpack.c.l.b16 %v764
        %v803 = vunpack.c.l.b16 %v765
        %v804 = vunpack.c.l.b16 %v766
        %v805 = vunpack.c.l.b16 %v767
        %v806 = vpack.c.b16 %v791, %v790
        %v807 = vpack.c.b16 %v793, %v792
        %v808 = vpack.c.b16 %v795, %v794
        %v809 = vpack.c.b16 %v797, %v796
        %v810 = vpack.c.b16 %v799, %v798
        %v811 = vpack.c.b16 %v801, %v800
        %v812 = vpack.c.b16 %v803, %v802
        %v813 = vpack.c.b16 %v805, %v804
        %822 = vmatprep.subr.bf16.mxu0 0
        %823 = vmatpush1.bf16.msra.mxu0 %v806
        %824 = vmatprep.subr.bf16.mxu0 0
        %825 = vmatpush1.bf16.msra.mxu0 %v807
        %826 = vmatprep.subr.bf16.mxu0 0
        %827 = vmatpush1.bf16.msra.mxu0 %v808
        %828 = vmatprep.subr.bf16.mxu0 0
        %829 = vmatpush1.bf16.msra.mxu0 %v809
        %830 = vmatprep.subr.bf16.mxu0 0
        %831 = vmatpush1.bf16.msra.mxu0 %v810
        %832 = vmatprep.subr.bf16.mxu0 0
        %833 = vmatpush1.bf16.msra.mxu0 %v811
        %834 = vmatprep.subr.bf16.mxu0 0
        %835 = vmatpush1.bf16.msra.mxu0 %v812
        %836 = vmatprep.subr.bf16.mxu0 0
        %837 = vmatpush1.bf16.msra.mxu0 %v813
        %838 = vmatprep.subr.bf16.mxu0 0
        %839 = vmatpush1.bf16.msra.mxu0 0
        %840 = vmatprep.subr.bf16.mxu0 0
        %841 = vmatpush1.bf16.msra.mxu0 0
        %842 = vmatprep.subr.bf16.mxu0 0
        %843 = vmatpush1.bf16.msra.mxu0 0
        %844 = vmatprep.subr.bf16.mxu0 0
        %845 = vmatpush1.bf16.msra.mxu0 0
        %846 = vmatprep.subr.bf16.mxu0 0
        %847 = vmatpush1.bf16.msra.mxu0 0
        %848 = vmatprep.subr.bf16.mxu0 0
        %849 = vmatpush1.bf16.msra.mxu0 0
        %850 = vmatprep.subr.bf16.mxu0 0
        %851 = vmatpush1.bf16.msra.mxu0 0
        %852 = vmatprep.subr.bf16.mxu0 0
        %853 = vmatpush1.bf16.msra.mxu0 0
        %854 = vmatprep.mubr.bf16.mxu0 0
        %855 = vmatmul.mubr.bf16.gmra.mrb[0].mxu0 %v772
        %v856 = vpop.f32.mrb[0].mxu0
        %v857 = vadd.f32 0.0, %v856
        %v858 = vpop.f32.mrb[0].mxu0
        %v859 = vpop.f32.mrb[0].mxu0
        %v860 = vadd.f32 0.0, %v859
        %v861 = vpop.f32.mrb[0].mxu0
        %862 = vdwg.mxu0
        %v863 = vpack.c.bf16 %v857, %v857
        %v864 = vpack.c.bf16 %v860, %v860
        %865 = vst [vmem:[%s297] sm:$0xf] %v863
        %866 = vst [vmem:[%s297 + $0x4] sm:$0xf] %v864
        %s867 = sand.u32 %s141, 1
        %s868 = scalar_lea.sflag [#allocation5], %s867
        %s869 = sand.u32 %s141, 1
        %s870 = smul.addr %s869, 8
        %s871 = scalar_lea.vmem [#allocation11], %s870
        // Predicated region
        $region57: #{tpu_custom_call.1} parent=35 // pred_check
          %p872 = pneg %p151
        $region58: #{tpu_custom_call.1} parent=35 // pred_check_branch
          %874 = sbr.rel (%p872) target = $region60
        $region59: #{tpu_custom_call.1} parent=35 // pred_region
          %s875 = smul.u32 2, %s29
          %s877 = ssub.s32 128, 128
          %878 = vsyncadd %s868, %s877
          %s879 = smul.addr %s875, 2
          %s880 = sadd.s32 %s30, %s879
          %s881 = smul.addr %s880, 64
          %s882 = scalar_lea.hbm %s4, %s881
          %s883 = sshll.u32 %s871, 4
          %s884 = int_to_ptr.vmem [resolvable:$true] %s883
          %889 = dma.vmem_to_hbm [thread:$0]  %s884, 128, %s882, %s868, 64, 128, 4
        $region60: #{tpu_custom_call.1} parent=35 // pred_fallthru
          _
      $region36: #{tpu_custom_call.1} parent=5 // pred_fallthru
        _
      %p890 = scmp.le.s32.totalorder 2, %s20
      // Predicated region
      $region61: #{tpu_custom_call.1} parent=5 // pred_check
        %p891 = pneg %p890
      $region62: #{tpu_custom_call.1} parent=5 // pred_check_branch
        %893 = sbr.rel (%p891) target = $region64
      $region63: #{tpu_custom_call.1} parent=5 // pred_region
        %s894 = ssub.s32 %s20, 2
        // Predicated region
        $region65: #{tpu_custom_call.1} parent=63 // pred_check
          %p895 = pneg %p157
        $region66: #{tpu_custom_call.1} parent=63 // pred_check_branch
          %897 = sbr.rel (%p895) target = $region68
        $region67: #{tpu_custom_call.1} parent=63 // pred_region
          %s898 = sand.u32 %s142, 1
          %s899 = scalar_lea.sflag [#allocation5], %s898
          %s900 = sand.u32 %s142, 1
          %s901 = smul.addr %s900, 8
          %s902 = scalar_lea.vmem [#allocation11], %s901
          %903 = dma.done %s899, 128
        $region68: #{tpu_custom_call.1} parent=63 // pred_fallthru
          _
      $region64: #{tpu_custom_call.1} parent=5 // pred_fallthru
        _
    $region6: #{tpu_custom_call.1} parent=1 // loop_footer
      %s24 = sadd.s32 1, %s20
    $region7: #{tpu_custom_call.1} parent=1 // loop_footer_branch
      %19 = sbr.rel target = $region3
    $region8: #{tpu_custom_call.1} parent=1 // loop_exit
      _
    %904 = vsyncpa [#allocation4], 1
    %s905 = scalar_lea.sflag [#allocation4], 1
    %906 = vsyncpa %s905, 1
    %907 = vsyncpa [#allocation7], 1
    %908 = vsyncpa [#allocation10], 1
    %s909 = scalar_lea.sflag [#allocation10], 1
    %910 = vsyncpa %s909, 1
    %911 = vsyncpa [#allocation5], 1
    %s912 = scalar_lea.sflag [#allocation5], 1
    %913 = vsyncpa %s912, 1

</llo_original>
